<compile_context>
chip_gen: v7x
topology: tpu7x:2x2x1
jax: 0.10.0
libtpu: 0.0.40
codegen_flags: <defaults>
</compile_context>

<pallas_src>
import functools

import jax
import jax.numpy as jnp
from jax.experimental import pallas as pl
from jax.experimental.pallas import tpu as pltpu


# ---------------------------------------------------------------------------
# chip-aware limits & small helpers
# ---------------------------------------------------------------------------
_VMEM_LIMIT_CACHE = None


def _get_vmem_limit():
    """Scoped-VMEM request that is safe on v5e/v6e (128 MiB) and v7x (64 MiB)."""
    global _VMEM_LIMIT_CACHE
    if _VMEM_LIMIT_CACHE is None:
        try:
            phys = int(pltpu.get_tpu_info().vmem_capacity_bytes)
        except Exception:          # interpret mode / API drift: be conservative
            phys = 64 << 20
        _VMEM_LIMIT_CACHE = min(48 << 20, (phys * 3) // 4)
    return _VMEM_LIMIT_CACHE


def _round_up(x, m):
    return (x + m - 1) // m * m


def _pad_axis(x, axis, new_size):
    pad = new_size - x.shape[axis]
    if pad == 0:
        return x
    cfg = [(0, 0)] * x.ndim
    cfg[axis] = (0, pad)
    return jnp.pad(x, cfg)


def _row_tile(m, cap=512):
    """Row (sublane) tile: multiple of 16 (bf16 packing), capped."""
    return min(_round_up(m, 16), cap)


def _lane_tile_for(m, k, budget_bytes=4 << 20, cap=2048):
    """Lane (spatial) tile for the deconv matmuls: multiple of 128, sized so the
    bf16 x block (4, K, tl) stays within `budget_bytes` (double-buffered by
    Pallas), which keeps the total footprint well under every chip's scoped
    VMEM."""
    t = budget_bytes // (4 * k * 2)
    t = max(128, min(cap, (t // 128) * 128))
    return min(t, _round_up(m, 128))


# ---------------------------------------------------------------------------
# Kernel 1: y = act(x @ w + b), M-tiled (fully connected layer)
# ---------------------------------------------------------------------------
def _linear_kernel(x_ref, w_ref, b_ref, o_ref, *, act):
    y = jnp.dot(x_ref[...], w_ref[...], preferred_element_type=jnp.float32)
    y = y + b_ref[...]
    if act == "relu":
        y = jnp.maximum(y, 0.0)
    elif act == "tanh":
        y = jnp.tanh(y)
    o_ref[...] = y.astype(o_ref.dtype)


def linear(x, w, b, *, act="none", out_dtype=jnp.bfloat16):
    M, K = x.shape
    N = w.shape[1]
    tm = _row_tile(M)
    Mp = _round_up(M, tm)
    xp = _pad_axis(x, 0, Mp).astype(jnp.bfloat16)
    out = pl.pallas_call(
        functools.partial(_linear_kernel, act=act),
        out_shape=jax.ShapeDtypeStruct((Mp, N), out_dtype),
        grid=(Mp // tm,),
        in_specs=[
            pl.BlockSpec((tm, K), lambda i: (i, 0)),
            pl.BlockSpec((K, N), lambda i: (0, 0)),
            pl.BlockSpec((1, N), lambda i: (0, 0)),
        ],
        out_specs=pl.BlockSpec((tm, N), lambda i: (i, 0)),
        compiler_params=pltpu.CompilerParams(
            dimension_semantics=("parallel",),
            vmem_limit_bytes=_get_vmem_limit()),
    )(xp, w.astype(jnp.bfloat16), b.reshape(1, N).astype(jnp.float32))
    return out[:M]


# ---------------------------------------------------------------------------
# Kernel 2 (deconv pass 1, transposed): for each output parity p
#     y_t[p] = W_p (Cout,K) @ x_p (K, tile)        (spatial on lanes)
# plus per-tile partial per-channel sum / sum-of-squares (BN statistics).
# All 4 parity weights are resident; one grid axis over spatial tiles;
# partial-stat outputs keep the axis "parallel" (no revisited accumulator).
# ---------------------------------------------------------------------------
def _deconv_mm_stats_kernel(x_ref, w_ref, y_ref, psum_ref, pssq_ref):
    # x_ref:  (4, K, tl)    bf16   | w_ref: (4, Cout, K) bf16 (resident)
    # y_ref:  (4, Cout, tl) bf16   | psum/pssq: (1, Cout, 1) f32 partials
    cout = y_ref.shape[1]
    acc_sum = jnp.zeros((cout, 1), jnp.float32)
    acc_ssq = jnp.zeros((cout, 1), jnp.float32)
    for p in range(4):                               # static unroll over parities
        y = jnp.dot(w_ref[p], x_ref[p], preferred_element_type=jnp.float32)
        y_ref[p] = y.astype(y_ref.dtype)             # bf16 intermediate
        acc_sum = acc_sum + jnp.sum(y, axis=1, keepdims=True)
        acc_ssq = acc_ssq + jnp.sum(y * y, axis=1, keepdims=True)
    psum_ref[0] = acc_sum
    pssq_ref[0] = acc_ssq


def deconv_matmul_stats(x_cols, w_cols, *, tl):
    _, K, Mp = x_cols.shape
    Cout = w_cols.shape[1]
    n_tiles = Mp // tl
    return pl.pallas_call(
        _deconv_mm_stats_kernel,
        out_shape=(
            jax.ShapeDtypeStruct((4, Cout, Mp), jnp.bfloat16),
            jax.ShapeDtypeStruct((n_tiles, Cout, 1), jnp.float32),
            jax.ShapeDtypeStruct((n_tiles, Cout, 1), jnp.float32),
        ),
        grid=(n_tiles,),
        in_specs=[
            pl.BlockSpec((4, K, tl), lambda i: (0, 0, i)),
            pl.BlockSpec((4, Cout, K), lambda i: (0, 0, 0)),
        ],
        out_specs=(
            pl.BlockSpec((4, Cout, tl), lambda i: (0, 0, i)),
            pl.BlockSpec((1, Cout, 1), lambda i: (i, 0, 0)),
            pl.BlockSpec((1, Cout, 1), lambda i: (i, 0, 0)),
        ),
        compiler_params=pltpu.CompilerParams(
            dimension_semantics=("parallel",),
            vmem_limit_bytes=_get_vmem_limit()),
    )(x_cols, w_cols)


# ---------------------------------------------------------------------------
# Kernel 3 (deconv pass 2): y -> relu(y * scale + shift)   (folded BatchNorm)
# Parity axis folded into the sublane dim; lane tile grown (mem-bound pass).
# ---------------------------------------------------------------------------
def _bn_relu_kernel(y_ref, scale_ref, shift_ref, o_ref):
    y = y_ref[...].astype(jnp.float32)
    o_ref[...] = jnp.maximum(y * scale_ref[...] + shift_ref[...], 0.0
                             ).astype(o_ref.dtype)


def bn_relu_apply(y, scale, shift, *, base_tile, out_dtype=jnp.bfloat16):
    R, Mp = y.shape                       # R = 4 * Cout
    tl2 = base_tile
    # grow the lane tile while it still divides Mp and the (in+out, double
    # buffered) block footprint stays small
    while (tl2 * 2 <= 8192 and Mp % (tl2 * 2) == 0
           and 8 * R * (tl2 * 2) <= (16 << 20)):
        tl2 *= 2
    return pl.pallas_call(
        _bn_relu_kernel,
        out_shape=jax.ShapeDtypeStruct((R, Mp), out_dtype),
        grid=(Mp // tl2,),
        in_specs=[
            pl.BlockSpec((R, tl2), lambda i: (0, i)),
            pl.BlockSpec((R, 1), lambda i: (0, 0)),
            pl.BlockSpec((R, 1), lambda i: (0, 0)),
        ],
        out_specs=pl.BlockSpec((R, tl2), lambda i: (0, i)),
        compiler_params=pltpu.CompilerParams(
            dimension_semantics=("parallel",),
            vmem_limit_bytes=_get_vmem_limit()),
    )(y, scale, shift)


# ---------------------------------------------------------------------------
# Kernel 4 (final deconv, transposed): out[p] = tanh(W_p @ x_p + b)
# ---------------------------------------------------------------------------
def _deconv_bias_tanh_kernel(w_ref, x_ref, b_ref, o_ref):
    for p in range(4):
        y = jnp.dot(w_ref[p], x_ref[p], preferred_element_type=jnp.float32)
        o_ref[p] = jnp.tanh(y + b_ref[...]).astype(o_ref.dtype)


# ---------------------------------------------------------------------------
# ConvTranspose2d(k=4, s=2, p=1) parity decomposition (JAX indexing glue).
# Transposed layout:   x_cols[p]  : (4*Cin, N*H*W)   (K = tap*Cin + ci)
#                      w_cols[p]  : (Cout, 4*Cin)
#                      y[p][c, m] = out[n, c, 2a+ph, 2b+pw],  p = 2*ph + pw
# ---------------------------------------------------------------------------
_PARITY_OFF = (0, 1)              # padded-row offset per output parity
_PARITY_KTAP = ((3, 1), (2, 0))   # kernel tap per (parity, window position)


def _conv_t_parity_cols_t(x_nchw):
    N, Cin, H, W = x_nchw.shape
    xp = jnp.pad(x_nchw, ((0, 0), (0, 0), (1, 1), (1, 1)))
    cols = []
    for ph in range(2):
        for pw in range(2):
            taps = []
            for dh in range(2):
                for dw in range(2):
                    hs = _PARITY_OFF[ph] + dh
                    ws = _PARITY_OFF[pw] + dw
                    taps.append(xp[:, :, hs:hs + H, ws:ws + W])   # (N,Cin,H,W)
            t = jnp.stack(taps, axis=0)            # (4, N, Cin, H, W)
            t = t.transpose(0, 2, 1, 3, 4)         # (4, Cin, N, H, W)
            cols.append(t.reshape(4 * Cin, N * H * W))
    return jnp.stack(cols, axis=0)                 # (4, 4*Cin, N*H*W)


def _conv_t_parity_weights_t(w_t):
    Cin, Cout, KH, KW = w_t.shape
    assert (KH, KW) == (4, 4)
    w_cols = []
    for ph in range(2):
        for pw in range(2):
            taps = []
            for dh in range(2):
                for dw in range(2):
                    kh = _PARITY_KTAP[ph][dh]
                    kw = _PARITY_KTAP[pw][dw]
                    taps.append(w_t[:, :, kh, kw].T)       # (Cout, Cin)
            w_cols.append(jnp.concatenate(taps, axis=1))   # (Cout, 4*Cin)
    return jnp.stack(w_cols, axis=0)                       # (4, Cout, 4*Cin)


def _parity_interleave_nchw(y, N, Cout, H, W):
    """(4*Cout, M) parity-major -> (N, Cout, 2H, 2W) NCHW."""
    y = y.reshape(2, 2, Cout, N, H, W)
    y = y.transpose(3, 2, 4, 0, 5, 1)              # (N, Cout, H, 2, W, 2)
    return y.reshape(N, Cout, 2 * H, 2 * W)


# ---------------------------------------------------------------------------
# deconv blocks
# ---------------------------------------------------------------------------
def deconv_bn_relu_block(x_nchw, w_t, gamma, beta, eps=1e-5):
    """ConvTranspose2d(4,2,1,bias=False) -> BatchNorm2d(train) -> ReLU."""
    N, Cin, H, W = x_nchw.shape
    Cout = w_t.shape[1]
    M = N * H * W
    K = 4 * Cin
    tl = _lane_tile_for(M, K)
    Mp = _round_up(M, tl)

    x_cols = _pad_axis(_conv_t_parity_cols_t(x_nchw.astype(jnp.bfloat16)), 2, Mp)
    w_cols = _conv_t_parity_weights_t(w_t).astype(jnp.bfloat16)

    y, psum, pssq = deconv_matmul_stats(x_cols, w_cols, tl=tl)

    # exact train-mode BN over all N*Hout*Wout = 4*M positions (biased var);
    # zero-padded lanes contribute nothing to the partial sums.
    count = jnp.float32(4 * M)
    mean = jnp.sum(psum, axis=0) / count                         # (Cout, 1)
    # TODO(synk): E[y^2]-E[y]^2 can cancel for |mean| >> std; switch to a
    # shifted/compensated accumulation if channels develop large means.
    var = jnp.maximum(jnp.sum(pssq, axis=0) / count - mean * mean, 0.0)
    scale = gamma.reshape(Cout, 1) * jax.lax.rsqrt(var + eps)
    shift = beta.reshape(Cout, 1) - mean * scale

    y2 = bn_relu_apply(
        y.reshape(4 * Cout, Mp),
        jnp.tile(scale, (4, 1)).astype(jnp.float32),
        jnp.tile(shift, (4, 1)).astype(jnp.float32),
        base_tile=tl)

    # TODO(synk): keep a parity-major layout between layers (or fuse the gather
    # into pass 1) to eliminate this interleave + the x_cols materialization.
    return _parity_interleave_nchw(y2[:, :M], N, Cout, H, W)


def final_deconv_tanh(x_nchw, w_t, bias):
    """ConvTranspose2d(4,2,1,bias=True) -> tanh, output NCHW."""
    N, Cin, H, W = x_nchw.shape
    Cout = w_t.shape[1]
    M = N * H * W
    K = 4 * Cin
    tl = _lane_tile_for(M, K)
    Mp = _round_up(M, tl)

    x_cols = _pad_axis(_conv_t_parity_cols_t(x_nchw.astype(jnp.bfloat16)), 2, Mp)
    w_cols = _conv_t_parity_weights_t(w_t).astype(jnp.bfloat16)
    b_col = bias.reshape(Cout, 1).astype(jnp.float32)

    y = pl.pallas_call(
        _deconv_bias_tanh_kernel,
        out_shape=jax.ShapeDtypeStruct((4, Cout, Mp), jnp.float32),
        grid=(Mp // tl,),
        in_specs=[
            pl.BlockSpec((4, Cout, K), lambda i: (0, 0, 0)),
            pl.BlockSpec((4, K, tl), lambda i: (0, 0, i)),
            pl.BlockSpec((Cout, 1), lambda i: (0, 0)),
        ],
        out_specs=pl.BlockSpec((4, Cout, tl), lambda i: (0, 0, i)),
        compiler_params=pltpu.CompilerParams(
            dimension_semantics=("parallel",),
            vmem_limit_bytes=_get_vmem_limit()),
    )(w_cols, x_cols, b_col)

    return _parity_interleave_nchw(
        y.reshape(4 * Cout, Mp)[:, :M], N, Cout, H, W)


# ---------------------------------------------------------------------------
# Generator: parameter init + forward
# ---------------------------------------------------------------------------
def init_generator_params(key, target_size, out_channels, z_size, conv_dim, depth):
    initial_size = target_size // 2 ** depth
    in_channels = conv_dim * 2 ** (depth - 1)
    assert initial_size >= 2
    params = {}
    k = key

    def nxt():
        nonlocal k
        k, sub = jax.random.split(k)
        return sub

    fc_out = in_channels * initial_size ** 2
    params["fc_w"] = jax.random.normal(nxt(), (z_size, fc_out), jnp.float32) * 0.05
    params["fc_b"] = jax.random.normal(nxt(), (fc_out,), jnp.float32) * 0.05

    params["deconv"] = []
    cur = in_channels
    for _ in range(depth - 1):
        params["deconv"].append({
            "w": jax.random.normal(nxt(), (cur, cur // 2, 4, 4), jnp.float32) * 0.05,
            "gamma": jnp.ones((cur // 2,), jnp.float32),
            "beta": jnp.zeros((cur // 2,), jnp.float32),
        })
        cur //= 2
    assert cur == conv_dim

    params["final_w"] = jax.random.normal(
        nxt(), (conv_dim, out_channels, 4, 4), jnp.float32) * 0.05
    params["final_b"] = jax.random.normal(
        nxt(), (out_channels,), jnp.float32) * 0.05
    return params


def generator_forward(z, params, *, target_size, out_channels, z_size,
                      conv_dim, depth):
    initial_size = target_size // 2 ** depth
    in_channels = conv_dim * 2 ** (depth - 1)
    N = z.shape[0]

    # fc (Linear) -> PyTorch .view gives NCHW directly; kept NCHW throughout.
    h = linear(z, params["fc_w"], params["fc_b"], act="none",
               out_dtype=jnp.bfloat16)
    x = h.reshape(N, in_channels, initial_size, initial_size)

    # deconv blocks: ConvTranspose2d(no bias) + BatchNorm(train) + ReLU
    for blk in params["deconv"]:
        x = deconv_bn_relu_block(x, blk["w"], blk["gamma"], blk["beta"])

    # final ConvTranspose2d (with bias) + tanh, emitted in NCHW
    return final_deconv_tanh(x, params["final_w"], params["final_b"])


# ---------------------------------------------------------------------------
# pure-JAX float32 reference (zero-insertion im2col formulation) for checking
# ---------------------------------------------------------------------------
def _ref_conv_transpose(x_nhwc, w_t, stride=2, pad=1):
    N, H, W, Cin = x_nhwc.shape
    _, Cout, KH, KW = w_t.shape
    Hd, Wd = (H - 1) * stride + 1, (W - 1) * stride + 1
    xd = jnp.zeros((N, Hd, Wd, Cin), jnp.float32)
    xd = xd.at[:, ::stride, ::stride, :].set(x_nhwc)
    pp = KH - 1 - pad
    xp = jnp.pad(xd, ((0, 0), (pp, pp), (pp, pp), (0, 0)))
    Ho = (H - 1) * stride - 2 * pad + KH
    Wo = (W - 1) * stride - 2 * pad + KW
    patches = [xp[:, kh:kh + Ho, kw:kw + Wo, :]
               for kh in range(KH) for kw in range(KW)]
    p = jnp.stack(patches, axis=3).reshape(N * Ho * Wo, KH * KW * Cin)
    wc = jnp.flip(w_t, axis=(2, 3)).transpose(2, 3, 0, 1).reshape(KH * KW * Cin, Cout)
    return (p @ wc).reshape(N, Ho, Wo, Cout)


def generator_reference(z, params, *, target_size, out_channels, z_size,
                        conv_dim, depth):
    initial_size = target_size // 2 ** depth
    in_channels = conv_dim * 2 ** (depth - 1)
    N = z.shape[0]
    h = z @ params["fc_w"] + params["fc_b"]
    x = h.reshape(N, in_channels, initial_size, initial_size).transpose(0, 2, 3, 1)
    for blk in params["deconv"]:
        y = _ref_conv_transpose(x, blk["w"])
        mean = jnp.mean(y, axis=(0, 1, 2), keepdims=True)
        var = jnp.mean(jnp.square(y - mean), axis=(0, 1, 2), keepdims=True)
        y = (y - mean) * jax.lax.rsqrt(var + 1e-5)
        y = y * blk["gamma"].reshape(1, 1, 1, -1) + blk["beta"].reshape(1, 1, 1, -1)
        x = jnp.maximum(y, 0.0)
    y = _ref_conv_transpose(x, params["final_w"]) + params["final_b"].reshape(1, 1, 1, -1)
    return jnp.tanh(y).transpose(0, 3, 1, 2)


# ---------------------------------------------------------------------------
if __name__ == "__main__":
    # initial_size = 16 // 2**2 = 4 >= 2, in_channels = 8 * 2**(2-1) = 16
    target_size, out_channels, z_size, conv_dim, depth = 16, 3, 8, 8, 2
    batch = 2

    key = jax.random.PRNGKey(0)
    key, zkey = jax.random.split(key)
    params = init_generator_params(key, target_size, out_channels, z_size,
                                   conv_dim, depth)
    z = jax.random.normal(zkey, (batch, z_size), jnp.float32)

    fwd = jax.jit(functools.partial(
        generator_forward, target_size=target_size, out_channels=out_channels,
        z_size=z_size, conv_dim=conv_dim, depth=depth))
    out = jax.block_until_ready(fwd(z, params))

    assert out.shape == (batch, out_channels, target_size, target_size), out.shape
    assert bool(jnp.all(jnp.isfinite(out)))

    ref = generator_reference(z, params, target_size=target_size,
                              out_channels=out_channels, z_size=z_size,
                              conv_dim=conv_dim, depth=depth)
    err = float(jnp.max(jnp.abs(out.astype(jnp.float32) - ref)))
    assert err < 1e-1, f"max abs error vs reference: {err}"

    print("KERNEL_OK")
</pallas_src>

<mosaic_0001>
module attributes {stable_mosaic.version = 11 : i64} {
  func.func @_linear_kernel(%arg0: i32, %arg1: memref<16x8xbf16, #tpu.memory_space<vmem>>, %arg2: memref<8x256xbf16, #tpu.memory_space<vmem>>, %arg3: memref<1x256xf32, #tpu.memory_space<vmem>>, %arg4: memref<16x256xbf16, #tpu.memory_space<vmem>>) attributes {dimension_semantics = [#tpu.dimension_semantics<parallel>], iteration_bounds = array<i64: 1>, scalar_prefetch = 0 : i64, scratch_operands = 0 : i64, tpu.core_type = #tpu.core_type<tc>, window_params = [{transform_indices = @transform_0, window_bounds = array<i64: 16, 8>}, {pipeline_mode = #tpu.pipeline_mode<synchronous>, transform_indices = @transform_1, window_bounds = array<i64: 8, 256>}, {pipeline_mode = #tpu.pipeline_mode<synchronous>, transform_indices = @transform_2, window_bounds = array<i64: 1, 256>}, {transform_indices = @transform_3, window_bounds = array<i64: 16, 256>}]} {
    %c0 = arith.constant 0 : index
    %c0_0 = arith.constant 0 : index
    %0 = vector.load %arg1[%c0, %c0_0] : memref<16x8xbf16, #tpu.memory_space<vmem>>, vector<16x8xbf16>
    %c0_1 = arith.constant 0 : index
    %c0_2 = arith.constant 0 : index
    %1 = vector.load %arg2[%c0_1, %c0_2] : memref<8x256xbf16, #tpu.memory_space<vmem>>, vector<8x256xbf16>
    %cst = arith.constant dense<0.000000e+00> : vector<16x256xf32>
    %2 = tpu.matmul %0, %1, %cst {dimension_numbers = #tpu.dot_dimension_numbers<[1], [0], [0], [1], [0, 0, 1, 1], [], []>} : vector<16x8xbf16>, vector<8x256xbf16>, vector<16x256xf32> -> vector<16x256xf32>
    %c0_3 = arith.constant 0 : index
    %c0_4 = arith.constant 0 : index
    %3 = vector.load %arg3[%c0_3, %c0_4] : memref<1x256xf32, #tpu.memory_space<vmem>>, vector<1x256xf32>
    %4 = vector.broadcast %3 : vector<1x256xf32> to vector<16x256xf32>
    %5 = arith.addf %2, %4 : vector<16x256xf32>
    %6 = arith.truncf %5 : vector<16x256xf32> to vector<16x256xbf16>
    %c0_5 = arith.constant 0 : index
    %c0_6 = arith.constant 0 : index
    %7 = vector.load %arg4[%c0_5, %c0_6] : memref<16x256xbf16, #tpu.memory_space<vmem>>, vector<16x256xbf16>
    tpu.vector_store %arg4[%c0_5, %c0_6], %6 {strides = array<i32>} : memref<16x256xbf16, #tpu.memory_space<vmem>>, vector<16x256xbf16>,
    return
  }
  func.func @transform_0(%arg0: i32) -> (i32, i32) {
    %c0_i32 = arith.constant 0 : i32
    %c0_i32_0 = arith.constant 0 : i32
    return %arg0, %c0_i32 : i32, i32
  }
  func.func @transform_1(%arg0: i32) -> (i32, i32) {
    %c0_i32 = arith.constant 0 : i32
    %c0_i32_0 = arith.constant 0 : i32
    %c0_i32_1 = arith.constant 0 : i32
    return %c0_i32, %c0_i32_0 : i32, i32
  }
  func.func @transform_2(%arg0: i32) -> (i32, i32) {
    %c0_i32 = arith.constant 0 : i32
    %c0_i32_0 = arith.constant 0 : i32
    %c0_i32_1 = arith.constant 0 : i32
    return %c0_i32, %c0_i32_0 : i32, i32
  }
  func.func @transform_3(%arg0: i32) -> (i32, i32) {
    %c0_i32 = arith.constant 0 : i32
    %c0_i32_0 = arith.constant 0 : i32
    return %arg0, %c0_i32 : i32, i32
  }
}

module attributes {stable_mosaic.version = 11 : i64} {
  func.func @_deconv_mm_stats_kernel(%arg0: i32, %arg1: memref<4x64x128xbf16, #tpu.memory_space<vmem>>, %arg2: memref<4x8x64xbf16, #tpu.memory_space<vmem>>, %arg3: memref<4x8x128xbf16, #tpu.memory_space<vmem>>, %arg4: memref<1x8x1xf32, #tpu.memory_space<vmem>>, %arg5: memref<1x8x1xf32, #tpu.memory_space<vmem>>) attributes {dimension_semantics = [#tpu.dimension_semantics<parallel>], iteration_bounds = array<i64: 1>, scalar_prefetch = 0 : i64, scratch_operands = 0 : i64, tpu.core_type = #tpu.core_type<tc>, window_params = [{transform_indices = @transform_0, window_bounds = array<i64: 4, 64, 128>}, {pipeline_mode = #tpu.pipeline_mode<synchronous>, transform_indices = @transform_1, window_bounds = array<i64: 4, 8, 64>}, {transform_indices = @transform_2, window_bounds = array<i64: 4, 8, 128>}, {transform_indices = @transform_3, window_bounds = array<i64: 1, 8, 1>}, {transform_indices = @transform_4, window_bounds = array<i64: 1, 8, 1>}]} {
    %cst = arith.constant 0.000000e+00 : f32
    %0 = vector.broadcast %cst : f32 to vector<8x1xf32>
    %cst_0 = arith.constant 0.000000e+00 : f32
    %1 = vector.broadcast %cst_0 : f32 to vector<8x1xf32>
    %c0 = arith.constant 0 : index
    %c0_1 = arith.constant 0 : index
    %c0_2 = arith.constant 0 : index
    %2 = vector.load %arg2[%c0, %c0_1, %c0_2] : memref<4x8x64xbf16, #tpu.memory_space<vmem>>, vector<1x8x64xbf16>
    %3 = vector.shape_cast %2 : vector<1x8x64xbf16> to vector<8x64xbf16>
    %c0_3 = arith.constant 0 : index
    %c0_4 = arith.constant 0 : index
    %c0_5 = arith.constant 0 : index
    %4 = vector.load %arg1[%c0_3, %c0_4, %c0_5] : memref<4x64x128xbf16, #tpu.memory_space<vmem>>, vector<1x64x128xbf16>
    %5 = vector.shape_cast %4 : vector<1x64x128xbf16> to vector<64x128xbf16>
    %cst_6 = arith.constant dense<0.000000e+00> : vector<8x128xf32>
    %6 = tpu.matmul %3, %5, %cst_6 {dimension_numbers = #tpu.dot_dimension_numbers<[1], [0], [0], [1], [0, 0, 1, 1], [], []>} : vector<8x64xbf16>, vector<64x128xbf16>, vector<8x128xf32> -> vector<8x128xf32>
    %7 = arith.truncf %6 : vector<8x128xf32> to vector<8x128xbf16>
    %c0_7 = arith.constant 0 : index
    %c0_8 = arith.constant 0 : index
    %c0_9 = arith.constant 0 : index
    %8 = vector.load %arg3[%c0_7, %c0_8, %c0_9] : memref<4x8x128xbf16, #tpu.memory_space<vmem>>, vector<1x8x128xbf16>
    %9 = vector.shape_cast %8 : vector<1x8x128xbf16> to vector<8x128xbf16>
    %10 = vector.shape_cast %7 : vector<8x128xbf16> to vector<1x8x128xbf16>
    tpu.vector_store %arg3[%c0_7, %c0_8, %c0_9], %10 {strides = array<i32>} : memref<4x8x128xbf16, #tpu.memory_space<vmem>>, vector<1x8x128xbf16>,
    %cst_10 = arith.constant dense<0.000000e+00> : vector<8xf32>
    %11 = vector.multi_reduction <add>, %6, %cst_10 [1] : vector<8x128xf32> to vector<8xf32>
    %12 = vector.shape_cast %11 : vector<8xf32> to vector<8x1xf32>
    %13 = arith.addf %0, %12 : vector<8x1xf32>
    %14 = arith.mulf %6, %6 : vector<8x128xf32>
    %cst_11 = arith.constant dense<0.000000e+00> : vector<8xf32>
    %15 = vector.multi_reduction <add>, %14, %cst_11 [1] : vector<8x128xf32> to vector<8xf32>
    %16 = vector.shape_cast %15 : vector<8xf32> to vector<8x1xf32>
    %17 = arith.addf %1, %16 : vector<8x1xf32>
    %c1 = arith.constant 1 : index
    %c0_12 = arith.constant 0 : index
    %c0_13 = arith.constant 0 : index
    %18 = vector.load %arg2[%c1, %c0_12, %c0_13] : memref<4x8x64xbf16, #tpu.memory_space<vmem>>, vector<1x8x64xbf16>
    %19 = vector.shape_cast %18 : vector<1x8x64xbf16> to vector<8x64xbf16>
    %c1_14 = arith.constant 1 : index
    %c0_15 = arith.constant 0 : index
    %c0_16 = arith.constant 0 : index
    %20 = vector.load %arg1[%c1_14, %c0_15, %c0_16] : memref<4x64x128xbf16, #tpu.memory_space<vmem>>, vector<1x64x128xbf16>
    %21 = vector.shape_cast %20 : vector<1x64x128xbf16> to vector<64x128xbf16>
    %cst_17 = arith.constant dense<0.000000e+00> : vector<8x128xf32>
    %22 = tpu.matmul %19, %21, %cst_17 {dimension_numbers = #tpu.dot_dimension_numbers<[1], [0], [0], [1], [0, 0, 1, 1], [], []>} : vector<8x64xbf16>, vector<64x128xbf16>, vector<8x128xf32> -> vector<8x128xf32>
    %23 = arith.truncf %22 : vector<8x128xf32> to vector<8x128xbf16>
    %c1_18 = arith.constant 1 : index
    %c0_19 = arith.constant 0 : index
    %c0_20 = arith.constant 0 : index
    %24 = vector.load %arg3[%c1_18, %c0_19, %c0_20] : memref<4x8x128xbf16, #tpu.memory_space<vmem>>, vector<1x8x128xbf16>
    %25 = vector.shape_cast %24 : vector<1x8x128xbf16> to vector<8x128xbf16>
    %26 = vector.shape_cast %23 : vector<8x128xbf16> to vector<1x8x128xbf16>
    tpu.vector_store %arg3[%c1_18, %c0_19, %c0_20], %26 {strides = array<i32>} : memref<4x8x128xbf16, #tpu.memory_space<vmem>>, vector<1x8x128xbf16>,
    %cst_21 = arith.constant dense<0.000000e+00> : vector<8xf32>
    %27 = vector.multi_reduction <add>, %22, %cst_21 [1] : vector<8x128xf32> to vector<8xf32>
    %28 = vector.shape_cast %27 : vector<8xf32> to vector<8x1xf32>
    %29 = arith.addf %13, %28 : vector<8x1xf32>
    %30 = arith.mulf %22, %22 : vector<8x128xf32>
    %cst_22 = arith.constant dense<0.000000e+00> : vector<8xf32>
    %31 = vector.multi_reduction <add>, %30, %cst_22 [1] : vector<8x128xf32> to vector<8xf32>
    %32 = vector.shape_cast %31 : vector<8xf32> to vector<8x1xf32>
    %33 = arith.addf %17, %32 : vector<8x1xf32>
    %c2 = arith.constant 2 : index
    %c0_23 = arith.constant 0 : index
    %c0_24 = arith.constant 0 : index
    %34 = vector.load %arg2[%c2, %c0_23, %c0_24] : memref<4x8x64xbf16, #tpu.memory_space<vmem>>, vector<1x8x64xbf16>
    %35 = vector.shape_cast %34 : vector<1x8x64xbf16> to vector<8x64xbf16>
    %c2_25 = arith.constant 2 : index
    %c0_26 = arith.constant 0 : index
    %c0_27 = arith.constant 0 : index
    %36 = vector.load %arg1[%c2_25, %c0_26, %c0_27] : memref<4x64x128xbf16, #tpu.memory_space<vmem>>, vector<1x64x128xbf16>
    %37 = vector.shape_cast %36 : vector<1x64x128xbf16> to vector<64x128xbf16>
    %cst_28 = arith.constant dense<0.000000e+00> : vector<8x128xf32>
    %38 = tpu.matmul %35, %37, %cst_28 {dimension_numbers = #tpu.dot_dimension_numbers<[1], [0], [0], [1], [0, 0, 1, 1], [], []>} : vector<8x64xbf16>, vector<64x128xbf16>, vector<8x128xf32> -> vector<8x128xf32>
    %39 = arith.truncf %38 : vector<8x128xf32> to vector<8x128xbf16>
    %c2_29 = arith.constant 2 : index
    %c0_30 = arith.constant 0 : index
    %c0_31 = arith.constant 0 : index
    %40 = vector.load %arg3[%c2_29, %c0_30, %c0_31] : memref<4x8x128xbf16, #tpu.memory_space<vmem>>, vector<1x8x128xbf16>
    %41 = vector.shape_cast %40 : vector<1x8x128xbf16> to vector<8x128xbf16>
    %42 = vector.shape_cast %39 : vector<8x128xbf16> to vector<1x8x128xbf16>
    tpu.vector_store %arg3[%c2_29, %c0_30, %c0_31], %42 {strides = array<i32>} : memref<4x8x128xbf16, #tpu.memory_space<vmem>>, vector<1x8x128xbf16>,
    %cst_32 = arith.constant dense<0.000000e+00> : vector<8xf32>
    %43 = vector.multi_reduction <add>, %38, %cst_32 [1] : vector<8x128xf32> to vector<8xf32>
    %44 = vector.shape_cast %43 : vector<8xf32> to vector<8x1xf32>
    %45 = arith.addf %29, %44 : vector<8x1xf32>
    %46 = arith.mulf %38, %38 : vector<8x128xf32>
    %cst_33 = arith.constant dense<0.000000e+00> : vector<8xf32>
    %47 = vector.multi_reduction <add>, %46, %cst_33 [1] : vector<8x128xf32> to vector<8xf32>
    %48 = vector.shape_cast %47 : vector<8xf32> to vector<8x1xf32>
    %49 = arith.addf %33, %48 : vector<8x1xf32>
    %c3 = arith.constant 3 : index
    %c0_34 = arith.constant 0 : index
    %c0_35 = arith.constant 0 : index
    %50 = vector.load %arg2[%c3, %c0_34, %c0_35] : memref<4x8x64xbf16, #tpu.memory_space<vmem>>, vector<1x8x64xbf16>
    %51 = vector.shape_cast %50 : vector<1x8x64xbf16> to vector<8x64xbf16>
    %c3_36 = arith.constant 3 : index
    %c0_37 = arith.constant 0 : index
    %c0_38 = arith.constant 0 : index
    %52 = vector.load %arg1[%c3_36, %c0_37, %c0_38] : memref<4x64x128xbf16, #tpu.memory_space<vmem>>, vector<1x64x128xbf16>
    %53 = vector.shape_cast %52 : vector<1x64x128xbf16> to vector<64x128xbf16>
    %cst_39 = arith.constant dense<0.000000e+00> : vector<8x128xf32>
    %54 = tpu.matmul %51, %53, %cst_39 {dimension_numbers = #tpu.dot_dimension_numbers<[1], [0], [0], [1], [0, 0, 1, 1], [], []>} : vector<8x64xbf16>, vector<64x128xbf16>, vector<8x128xf32> -> vector<8x128xf32>
    %55 = arith.truncf %54 : vector<8x128xf32> to vector<8x128xbf16>
    %c3_40 = arith.constant 3 : index
    %c0_41 = arith.constant 0 : index
    %c0_42 = arith.constant 0 : index
    %56 = vector.load %arg3[%c3_40, %c0_41, %c0_42] : memref<4x8x128xbf16, #tpu.memory_space<vmem>>, vector<1x8x128xbf16>
    %57 = vector.shape_cast %56 : vector<1x8x128xbf16> to vector<8x128xbf16>
    %58 = vector.shape_cast %55 : vector<8x128xbf16> to vector<1x8x128xbf16>
    tpu.vector_store %arg3[%c3_40, %c0_41, %c0_42], %58 {strides = array<i32>} : memref<4x8x128xbf16, #tpu.memory_space<vmem>>, vector<1x8x128xbf16>,
    %cst_43 = arith.constant dense<0.000000e+00> : vector<8xf32>
    %59 = vector.multi_reduction <add>, %54, %cst_43 [1] : vector<8x128xf32> to vector<8xf32>
    %60 = vector.shape_cast %59 : vector<8xf32> to vector<8x1xf32>
    %61 = arith.addf %45, %60 : vector<8x1xf32>
    %62 = arith.mulf %54, %54 : vector<8x128xf32>
    %cst_44 = arith.constant dense<0.000000e+00> : vector<8xf32>
    %63 = vector.multi_reduction <add>, %62, %cst_44 [1] : vector<8x128xf32> to vector<8xf32>
    %64 = vector.shape_cast %63 : vector<8xf32> to vector<8x1xf32>
    %65 = arith.addf %49, %64 : vector<8x1xf32>
    %c0_45 = arith.constant 0 : index
    %c0_46 = arith.constant 0 : index
    %c0_47 = arith.constant 0 : index
    %66 = vector.load %arg4[%c0_45, %c0_46, %c0_47] : memref<1x8x1xf32, #tpu.memory_space<vmem>>, vector<1x8x1xf32>
    %67 = vector.shape_cast %66 : vector<1x8x1xf32> to vector<8x1xf32>
    %68 = vector.shape_cast %61 : vector<8x1xf32> to vector<1x8x1xf32>
    tpu.vector_store %arg4[%c0_45, %c0_46, %c0_47], %68 {strides = array<i32>} : memref<1x8x1xf32, #tpu.memory_space<vmem>>, vector<1x8x1xf32>,
    %c0_48 = arith.constant 0 : index
    %c0_49 = arith.constant 0 : index
    %c0_50 = arith.constant 0 : index
    %69 = vector.load %arg5[%c0_48, %c0_49, %c0_50] : memref<1x8x1xf32, #tpu.memory_space<vmem>>, vector<1x8x1xf32>
    %70 = vector.shape_cast %69 : vector<1x8x1xf32> to vector<8x1xf32>
    %71 = vector.shape_cast %65 : vector<8x1xf32> to vector<1x8x1xf32>
    tpu.vector_store %arg5[%c0_48, %c0_49, %c0_50], %71 {strides = array<i32>} : memref<1x8x1xf32, #tpu.memory_space<vmem>>, vector<1x8x1xf32>,
    return
  }
  func.func @transform_0(%arg0: i32) -> (i32, i32, i32) {
    %c0_i32 = arith.constant 0 : i32
    %c0_i32_0 = arith.constant 0 : i32
    %c0_i32_1 = arith.constant 0 : i32
    return %c0_i32, %c0_i32_0, %arg0 : i32, i32, i32
  }
  func.func @transform_1(%arg0: i32) -> (i32, i32, i32) {
    %c0_i32 = arith.constant 0 : i32
    %c0_i32_0 = arith.constant 0 : i32
    %c0_i32_1 = arith.constant 0 : i32
    %c0_i32_2 = arith.constant 0 : i32
    return %c0_i32, %c0_i32_0, %c0_i32_1 : i32, i32, i32
  }
  func.func @transform_2(%arg0: i32) -> (i32, i32, i32) {
    %c0_i32 = arith.constant 0 : i32
    %c0_i32_0 = arith.constant 0 : i32
    %c0_i32_1 = arith.constant 0 : i32
    return %c0_i32, %c0_i32_0, %arg0 : i32, i32, i32
  }
  func.func @transform_3(%arg0: i32) -> (i32, i32, i32) {
    %c0_i32 = arith.constant 0 : i32
    %c0_i32_0 = arith.constant 0 : i32
    %c0_i32_1 = arith.constant 0 : i32
    return %arg0, %c0_i32, %c0_i32_0 : i32, i32, i32
  }
  func.func @transform_4(%arg0: i32) -> (i32, i32, i32) {
    %c0_i32 = arith.constant 0 : i32
    %c0_i32_0 = arith.constant 0 : i32
    %c0_i32_1 = arith.constant 0 : i32
    return %arg0, %c0_i32, %c0_i32_0 : i32, i32, i32
  }
}

module attributes {stable_mosaic.version = 11 : i64} {
  func.func @_bn_relu_kernel(%arg0: i32, %arg1: memref<32x128xbf16, #tpu.memory_space<vmem>>, %arg2: memref<32x1xf32, #tpu.memory_space<vmem>>, %arg3: memref<32x1xf32, #tpu.memory_space<vmem>>, %arg4: memref<32x128xbf16, #tpu.memory_space<vmem>>) attributes {dimension_semantics = [#tpu.dimension_semantics<parallel>], iteration_bounds = array<i64: 1>, scalar_prefetch = 0 : i64, scratch_operands = 0 : i64, tpu.core_type = #tpu.core_type<tc>, window_params = [{transform_indices = @transform_0, window_bounds = array<i64: 32, 128>}, {pipeline_mode = #tpu.pipeline_mode<synchronous>, transform_indices = @transform_1, window_bounds = array<i64: 32, 1>}, {pipeline_mode = #tpu.pipeline_mode<synchronous>, transform_indices = @transform_2, window_bounds = array<i64: 32, 1>}, {transform_indices = @transform_3, window_bounds = array<i64: 32, 128>}]} {
    %c0 = arith.constant 0 : index
    %c0_0 = arith.constant 0 : index
    %0 = vector.load %arg1[%c0, %c0_0] : memref<32x128xbf16, #tpu.memory_space<vmem>>, vector<32x128xbf16>
    %1 = arith.extf %0 : vector<32x128xbf16> to vector<32x128xf32>
    %c0_1 = arith.constant 0 : index
    %c0_2 = arith.constant 0 : index
    %2 = vector.load %arg2[%c0_1, %c0_2] : memref<32x1xf32, #tpu.memory_space<vmem>>, vector<32x1xf32>
    %3 = vector.broadcast %2 : vector<32x1xf32> to vector<32x128xf32>
    %4 = arith.mulf %1, %3 : vector<32x128xf32>
    %c0_3 = arith.constant 0 : index
    %c0_4 = arith.constant 0 : index
    %5 = vector.load %arg3[%c0_3, %c0_4] : memref<32x1xf32, #tpu.memory_space<vmem>>, vector<32x1xf32>
    %6 = vector.broadcast %5 : vector<32x1xf32> to vector<32x128xf32>
    %7 = arith.addf %4, %6 : vector<32x128xf32>
    %cst = arith.constant 0.000000e+00 : f32
    %8 = vector.broadcast %cst : f32 to vector<32x128xf32>
    %9 = arith.maximumf %7, %8 : vector<32x128xf32>
    %10 = arith.truncf %9 : vector<32x128xf32> to vector<32x128xbf16>
    %c0_5 = arith.constant 0 : index
    %c0_6 = arith.constant 0 : index
    %11 = vector.load %arg4[%c0_5, %c0_6] : memref<32x128xbf16, #tpu.memory_space<vmem>>, vector<32x128xbf16>
    tpu.vector_store %arg4[%c0_5, %c0_6], %10 {strides = array<i32>} : memref<32x128xbf16, #tpu.memory_space<vmem>>, vector<32x128xbf16>,
    return
  }
  func.func @transform_0(%arg0: i32) -> (i32, i32) {
    %c0_i32 = arith.constant 0 : i32
    %c0_i32_0 = arith.constant 0 : i32
    return %c0_i32, %arg0 : i32, i32
  }
  func.func @transform_1(%arg0: i32) -> (i32, i32) {
    %c0_i32 = arith.constant 0 : i32
    %c0_i32_0 = arith.constant 0 : i32
    %c0_i32_1 = arith.constant 0 : i32
    return %c0_i32, %c0_i32_0 : i32, i32
  }
  func.func @transform_2(%arg0: i32) -> (i32, i32) {
    %c0_i32 = arith.constant 0 : i32
    %c0_i32_0 = arith.constant 0 : i32
    %c0_i32_1 = arith.constant 0 : i32
    return %c0_i32, %c0_i32_0 : i32, i32
  }
  func.func @transform_3(%arg0: i32) -> (i32, i32) {
    %c0_i32 = arith.constant 0 : i32
    %c0_i32_0 = arith.constant 0 : i32
    return %c0_i32, %arg0 : i32, i32
  }
}

module attributes {stable_mosaic.version = 11 : i64} {
  func.func @_deconv_bias_tanh_kernel(%arg0: i32, %arg1: memref<4x3x32xbf16, #tpu.memory_space<vmem>>, %arg2: memref<4x32x128xbf16, #tpu.memory_space<vmem>>, %arg3: memref<3x1xf32, #tpu.memory_space<vmem>>, %arg4: memref<4x3x128xf32, #tpu.memory_space<vmem>>) attributes {dimension_semantics = [#tpu.dimension_semantics<parallel>], iteration_bounds = array<i64: 1>, scalar_prefetch = 0 : i64, scratch_operands = 0 : i64, tpu.core_type = #tpu.core_type<tc>, window_params = [{pipeline_mode = #tpu.pipeline_mode<synchronous>, transform_indices = @transform_0, window_bounds = array<i64: 4, 3, 32>}, {transform_indices = @transform_1, window_bounds = array<i64: 4, 32, 128>}, {pipeline_mode = #tpu.pipeline_mode<synchronous>, transform_indices = @transform_2, window_bounds = array<i64: 3, 1>}, {transform_indices = @transform_3, window_bounds = array<i64: 4, 3, 128>}]} {
    %c0 = arith.constant 0 : index
    %c0_0 = arith.constant 0 : index
    %c0_1 = arith.constant 0 : index
    %0 = vector.load %arg1[%c0, %c0_0, %c0_1] : memref<4x3x32xbf16, #tpu.memory_space<vmem>>, vector<1x3x32xbf16>
    %1 = vector.shape_cast %0 : vector<1x3x32xbf16> to vector<3x32xbf16>
    %c0_2 = arith.constant 0 : index
    %c0_3 = arith.constant 0 : index
    %c0_4 = arith.constant 0 : index
    %2 = vector.load %arg2[%c0_2, %c0_3, %c0_4] : memref<4x32x128xbf16, #tpu.memory_space<vmem>>, vector<1x32x128xbf16>
    %3 = vector.shape_cast %2 : vector<1x32x128xbf16> to vector<32x128xbf16>
    %cst = arith.constant dense<0.000000e+00> : vector<3x128xf32>
    %4 = tpu.matmul %1, %3, %cst {dimension_numbers = #tpu.dot_dimension_numbers<[1], [0], [0], [1], [0, 0, 1, 1], [], []>} : vector<3x32xbf16>, vector<32x128xbf16>, vector<3x128xf32> -> vector<3x128xf32>
    %c0_5 = arith.constant 0 : index
    %c0_6 = arith.constant 0 : index
    %5 = vector.load %arg3[%c0_5, %c0_6] : memref<3x1xf32, #tpu.memory_space<vmem>>, vector<3x1xf32>
    %6 = vector.broadcast %5 : vector<3x1xf32> to vector<3x128xf32>
    %7 = arith.addf %4, %6 : vector<3x128xf32>
    %8 = math.tanh %7 : vector<3x128xf32>
    %c0_7 = arith.constant 0 : index
    %c0_8 = arith.constant 0 : index
    %c0_9 = arith.constant 0 : index
    %9 = vector.load %arg4[%c0_7, %c0_8, %c0_9] : memref<4x3x128xf32, #tpu.memory_space<vmem>>, vector<1x3x128xf32>
    %10 = vector.shape_cast %9 : vector<1x3x128xf32> to vector<3x128xf32>
    %11 = vector.shape_cast %8 : vector<3x128xf32> to vector<1x3x128xf32>
    tpu.vector_store %arg4[%c0_7, %c0_8, %c0_9], %11 {strides = array<i32>} : memref<4x3x128xf32, #tpu.memory_space<vmem>>, vector<1x3x128xf32>,
    %c1 = arith.constant 1 : index
    %c0_10 = arith.constant 0 : index
    %c0_11 = arith.constant 0 : index
    %12 = vector.load %arg1[%c1, %c0_10, %c0_11] : memref<4x3x32xbf16, #tpu.memory_space<vmem>>, vector<1x3x32xbf16>
    %13 = vector.shape_cast %12 : vector<1x3x32xbf16> to vector<3x32xbf16>
    %c1_12 = arith.constant 1 : index
    %c0_13 = arith.constant 0 : index
    %c0_14 = arith.constant 0 : index
    %14 = vector.load %arg2[%c1_12, %c0_13, %c0_14] : memref<4x32x128xbf16, #tpu.memory_space<vmem>>, vector<1x32x128xbf16>
    %15 = vector.shape_cast %14 : vector<1x32x128xbf16> to vector<32x128xbf16>
    %cst_15 = arith.constant dense<0.000000e+00> : vector<3x128xf32>
    %16 = tpu.matmul %13, %15, %cst_15 {dimension_numbers = #tpu.dot_dimension_numbers<[1], [0], [0], [1], [0, 0, 1, 1], [], []>} : vector<3x32xbf16>, vector<32x128xbf16>, vector<3x128xf32> -> vector<3x128xf32>
    %c0_16 = arith.constant 0 : index
    %c0_17 = arith.constant 0 : index
    %17 = vector.load %arg3[%c0_16, %c0_17] : memref<3x1xf32, #tpu.memory_space<vmem>>, vector<3x1xf32>
    %18 = vector.broadcast %17 : vector<3x1xf32> to vector<3x128xf32>
    %19 = arith.addf %16, %18 : vector<3x128xf32>
    %20 = math.tanh %19 : vector<3x128xf32>
    %c1_18 = arith.constant 1 : index
    %c0_19 = arith.constant 0 : index
    %c0_20 = arith.constant 0 : index
    %21 = vector.load %arg4[%c1_18, %c0_19, %c0_20] : memref<4x3x128xf32, #tpu.memory_space<vmem>>, vector<1x3x128xf32>
    %22 = vector.shape_cast %21 : vector<1x3x128xf32> to vector<3x128xf32>
    %23 = vector.shape_cast %20 : vector<3x128xf32> to vector<1x3x128xf32>
    tpu.vector_store %arg4[%c1_18, %c0_19, %c0_20], %23 {strides = array<i32>} : memref<4x3x128xf32, #tpu.memory_space<vmem>>, vector<1x3x128xf32>,
    %c2 = arith.constant 2 : index
    %c0_21 = arith.constant 0 : index
    %c0_22 = arith.constant 0 : index
    %24 = vector.load %arg1[%c2, %c0_21, %c0_22] : memref<4x3x32xbf16, #tpu.memory_space<vmem>>, vector<1x3x32xbf16>
    %25 = vector.shape_cast %24 : vector<1x3x32xbf16> to vector<3x32xbf16>
    %c2_23 = arith.constant 2 : index
    %c0_24 = arith.constant 0 : index
    %c0_25 = arith.constant 0 : index
    %26 = vector.load %arg2[%c2_23, %c0_24, %c0_25] : memref<4x32x128xbf16, #tpu.memory_space<vmem>>, vector<1x32x128xbf16>
    %27 = vector.shape_cast %26 : vector<1x32x128xbf16> to vector<32x128xbf16>
    %cst_26 = arith.constant dense<0.000000e+00> : vector<3x128xf32>
    %28 = tpu.matmul %25, %27, %cst_26 {dimension_numbers = #tpu.dot_dimension_numbers<[1], [0], [0], [1], [0, 0, 1, 1], [], []>} : vector<3x32xbf16>, vector<32x128xbf16>, vector<3x128xf32> -> vector<3x128xf32>
    %c0_27 = arith.constant 0 : index
    %c0_28 = arith.constant 0 : index
    %29 = vector.load %arg3[%c0_27, %c0_28] : memref<3x1xf32, #tpu.memory_space<vmem>>, vector<3x1xf32>
    %30 = vector.broadcast %29 : vector<3x1xf32> to vector<3x128xf32>
    %31 = arith.addf %28, %30 : vector<3x128xf32>
    %32 = math.tanh %31 : vector<3x128xf32>
    %c2_29 = arith.constant 2 : index
    %c0_30 = arith.constant 0 : index
    %c0_31 = arith.constant 0 : index
    %33 = vector.load %arg4[%c2_29, %c0_30, %c0_31] : memref<4x3x128xf32, #tpu.memory_space<vmem>>, vector<1x3x128xf32>
    %34 = vector.shape_cast %33 : vector<1x3x128xf32> to vector<3x128xf32>
    %35 = vector.shape_cast %32 : vector<3x128xf32> to vector<1x3x128xf32>
    tpu.vector_store %arg4[%c2_29, %c0_30, %c0_31], %35 {strides = array<i32>} : memref<4x3x128xf32, #tpu.memory_space<vmem>>, vector<1x3x128xf32>,
    %c3 = arith.constant 3 : index
    %c0_32 = arith.constant 0 : index
    %c0_33 = arith.constant 0 : index
    %36 = vector.load %arg1[%c3, %c0_32, %c0_33] : memref<4x3x32xbf16, #tpu.memory_space<vmem>>, vector<1x3x32xbf16>
    %37 = vector.shape_cast %36 : vector<1x3x32xbf16> to vector<3x32xbf16>
    %c3_34 = arith.constant 3 : index
    %c0_35 = arith.constant 0 : index
    %c0_36 = arith.constant 0 : index
    %38 = vector.load %arg2[%c3_34, %c0_35, %c0_36] : memref<4x32x128xbf16, #tpu.memory_space<vmem>>, vector<1x32x128xbf16>
    %39 = vector.shape_cast %38 : vector<1x32x128xbf16> to vector<32x128xbf16>
    %cst_37 = arith.constant dense<0.000000e+00> : vector<3x128xf32>
    %40 = tpu.matmul %37, %39, %cst_37 {dimension_numbers = #tpu.dot_dimension_numbers<[1], [0], [0], [1], [0, 0, 1, 1], [], []>} : vector<3x32xbf16>, vector<32x128xbf16>, vector<3x128xf32> -> vector<3x128xf32>
    %c0_38 = arith.constant 0 : index
    %c0_39 = arith.constant 0 : index
    %41 = vector.load %arg3[%c0_38, %c0_39] : memref<3x1xf32, #tpu.memory_space<vmem>>, vector<3x1xf32>
    %42 = vector.broadcast %41 : vector<3x1xf32> to vector<3x128xf32>
    %43 = arith.addf %40, %42 : vector<3x128xf32>
    %44 = math.tanh %43 : vector<3x128xf32>
    %c3_40 = arith.constant 3 : index
    %c0_41 = arith.constant 0 : index
    %c0_42 = arith.constant 0 : index
    %45 = vector.load %arg4[%c3_40, %c0_41, %c0_42] : memref<4x3x128xf32, #tpu.memory_space<vmem>>, vector<1x3x128xf32>
    %46 = vector.shape_cast %45 : vector<1x3x128xf32> to vector<3x128xf32>
    %47 = vector.shape_cast %44 : vector<3x128xf32> to vector<1x3x128xf32>
    tpu.vector_store %arg4[%c3_40, %c0_41, %c0_42], %47 {strides = array<i32>} : memref<4x3x128xf32, #tpu.memory_space<vmem>>, vector<1x3x128xf32>,
    return
  }
  func.func @transform_0(%arg0: i32) -> (i32, i32, i32) {
    %c0_i32 = arith.constant 0 : i32
    %c0_i32_0 = arith.constant 0 : i32
    %c0_i32_1 = arith.constant 0 : i32
    %c0_i32_2 = arith.constant 0 : i32
    return %c0_i32, %c0_i32_0, %c0_i32_1 : i32, i32, i32
  }
  func.func @transform_1(%arg0: i32) -> (i32, i32, i32) {
    %c0_i32 = arith.constant 0 : i32
    %c0_i32_0 = arith.constant 0 : i32
    %c0_i32_1 = arith.constant 0 : i32
    return %c0_i32, %c0_i32_0, %arg0 : i32, i32, i32
  }
  func.func @transform_2(%arg0: i32) -> (i32, i32) {
    %c0_i32 = arith.constant 0 : i32
    %c0_i32_0 = arith.constant 0 : i32
    %c0_i32_1 = arith.constant 0 : i32
    return %c0_i32, %c0_i32_0 : i32, i32
  }
  func.func @transform_3(%arg0: i32) -> (i32, i32, i32) {
    %c0_i32 = arith.constant 0 : i32
    %c0_i32_0 = arith.constant 0 : i32
    %c0_i32_1 = arith.constant 0 : i32
    return %c0_i32, %c0_i32_0, %arg0 : i32, i32, i32
  }
}

</mosaic_0001>

<llo_original>
// kernel: generator_forward.4
$region0: #{generator_forward.4}
  #allocation0 [shape = 'u32[]', space=smem, size = 0x4, offset = 0x4, fixed_abs, tag = 'smem constant byte address 0x4 - core index']
  #allocation1 [shape = 'u32[144,128]{1,0:T(1,128)}', space=vmem, size = 0x12000, scoped, tag = 'internal scratch']
  %s0 = inlined_call_operand.vmem [shape: bf16[16,8], index: 0, kind: input, shape index: {}]
  %s1 = inlined_call_operand.vmem [shape: bf16[8,256], index: 1, kind: input, shape index: {}]
  %s2 = inlined_call_operand.vmem [shape: f32[1,256], index: 2, kind: input, shape index: {}]
  %s3 = inlined_call_operand.vmem [shape: bf16[16,256], index: 3, kind: output, shape index: {}]
  %s4 = sld [smem:[#allocation0]]
  $region22: #{generator_forward.4} parent=0
    _
  %s6 = ssub.s32 1, %s4
  %s7 = scalar_select 0, %s6, %s4
  // Predicated region
  $region2: #{generator_forward.4} parent=0 // pred_check
    _
  $region3: #{generator_forward.4} parent=0 // pred_check_branch
    %9 = sbr.rel (0) target = $region5
  $region4: #{generator_forward.4} parent=0 // pred_region
    _
  $region5: #{generator_forward.4} parent=0 // pred_fallthru
    _
  // Predicated region
  $region6: #{generator_forward.4} parent=0 // pred_check
    _
  $region7: #{generator_forward.4} parent=0 // pred_check_branch
    %11 = sbr.rel (0) target = $region9
  $region8: #{generator_forward.4} parent=0 // pred_region
    _
  $region9: #{generator_forward.4} parent=0 // pred_fallthru
    _
  // Predicated region
  $region10: #{generator_forward.4} parent=0 // pred_check
    _
  $region11: #{generator_forward.4} parent=0 // pred_check_branch
    %13 = sbr.rel (0) target = $region13
  $region12: #{generator_forward.4} parent=0 // pred_region
    _
  $region13: #{generator_forward.4} parent=0 // pred_fallthru
    _
  %v15 = vld [vmem:[%s0] sm:$0xf]
  %v16 = vld [vmem:[%s0 + $0x4] sm:$0xf]
  %v17 = vld [vmem:[%s1] sm:$0xff]
  %v18 = vld [vmem:[%s2] sm:$0x3]
  %v20 = vlaneseq
  %v21 = vshrl.u32 %v20, 7
  %v22 = vsub.s32 0, %v21
  %v23 = vrot.slane %v18, %v22
  %v24 = vlaneseq
  %v25 = vshrl.u32 %v24, 7
  %v26 = vsub.s32 1, %v25
  %v27 = vrot.slane %v18, %v26
  %v32 = vunpack.c.l.b16 %v15
  %v33 = vunpack.c.l.b16 %v16
  %v34 = vpack.c.b16 %v33, %v32
  %v36 = vunpack.c.l.b16 %v17
  %v37 = vunpack.c.h.b16 %v17
  %v38 = vpack.c.b16 %v36, %v36
  %v39 = vpack.c.b16 %v37, %v37
  %vm40 = vcmask 64512
  %v42 = vsel %vm40, %v34, 0
  %vm44 = vcmask 1043456
  %v46 = vsel %vm44, %v38, 0
  %v49 = vsel %vm44, %v39, 0
  %51 = vmatprep.subr.bf16.mxu0 %v49
  %52 = vmatpush1.bf16.msra.mxu0 %v46
  %53 = vmatprep.subr.bf16.mxu0 0
  %54 = vmatpush1.bf16.msra.mxu0 0
  %55 = vmatprep.subr.bf16.mxu0 0
  %56 = vmatpush1.bf16.msra.mxu0 0
  %57 = vmatprep.subr.bf16.mxu0 0
  %58 = vmatpush1.bf16.msra.mxu0 0
  %59 = vmatprep.subr.bf16.mxu0 0
  %60 = vmatpush1.bf16.msra.mxu0 0
  %61 = vmatprep.subr.bf16.mxu0 0
  %62 = vmatpush1.bf16.msra.mxu0 0
  %63 = vmatprep.subr.bf16.mxu0 0
  %64 = vmatpush1.bf16.msra.mxu0 0
  %65 = vmatprep.subr.bf16.mxu0 0
  %66 = vmatpush1.bf16.msra.mxu0 0
  %67 = vmatprep.subr.bf16.mxu0 0
  %68 = vmatpush1.bf16.msra.mxu0 0
  %69 = vmatprep.subr.bf16.mxu0 0
  %70 = vmatpush1.bf16.msra.mxu0 0
  %71 = vmatprep.subr.bf16.mxu0 0
  %72 = vmatpush1.bf16.msra.mxu0 0
  %73 = vmatprep.subr.bf16.mxu0 0
  %74 = vmatpush1.bf16.msra.mxu0 0
  %75 = vmatprep.subr.bf16.mxu0 0
  %76 = vmatpush1.bf16.msra.mxu0 0
  %77 = vmatprep.subr.bf16.mxu0 0
  %78 = vmatpush1.bf16.msra.mxu0 0
  %79 = vmatprep.subr.bf16.mxu0 0
  %80 = vmatpush1.bf16.msra.mxu0 0
  %81 = vmatprep.subr.bf16.mxu0 0
  %82 = vmatpush1.bf16.msra.mxu0 0
  %83 = vmatprep.mubr.bf16.mxu0 0
  %84 = vmatmul.mubr.bf16.gmra.mrb[0].mxu0 %v42
  %v85 = vpop.f32.mrb[0].mxu0
  %v86 = vadd.f32 %v23, %v85
  %v87 = vpop.f32.mrb[0].mxu0
  %v88 = vadd.f32 %v27, %v87
  %v89 = vpop.f32.mrb[0].mxu0
  %v90 = vadd.f32 %v23, %v89
  %v91 = vpop.f32.mrb[0].mxu0
  %v92 = vadd.f32 %v27, %v91
  %93 = vdwg.mxu0
  %v94 = vpack.c.bf16 %v90, %v86
  %v95 = vpack.c.bf16 %v92, %v88
  %v98 = vunpack.c.l.b16 %v94
  %v99 = vunpack.c.l.b16 %v95
  %v100 = vunpack.c.h.b16 %v94
  %v101 = vunpack.c.h.b16 %v95
  %v102 = vpack.c.b16 %v99, %v98
  %v103 = vpack.c.b16 %v101, %v100
  %106 = vst [vmem:[%s3] sm:$0xff] %v102
  %107 = vst [vmem:[%s3 + $0x8] sm:$0xff] %v103
  // Predicated region
  $region14: #{generator_forward.4} parent=0 // pred_check
    _
  $region15: #{generator_forward.4} parent=0 // pred_check_branch
    %109 = sbr.rel (0) target = $region17
  $region16: #{generator_forward.4} parent=0 // pred_region
    _
  $region17: #{generator_forward.4} parent=0 // pred_fallthru
    _
  // Predicated region
  $region18: #{generator_forward.4} parent=0 // pred_check
    _
  $region19: #{generator_forward.4} parent=0 // pred_check_branch
    %111 = sbr.rel (0) target = $region21
  $region20: #{generator_forward.4} parent=0 // pred_region
    _
  $region21: #{generator_forward.4} parent=0 // pred_fallthru
    _

// kernel: generator_forward.6
$region0: #{generator_forward.6}
  #allocation0 [shape = 'u32[]', space=smem, size = 0x4, offset = 0x4, fixed_abs, tag = 'smem constant byte address 0x4 - core index']
  #allocation1 [shape = 'u32[144,128]{1,0:T(1,128)}', space=vmem, size = 0x12000, scoped, tag = 'internal scratch']
  %s0 = inlined_call_operand.vmem [shape: bf16[32,128], index: 0, kind: input, shape index: {}]
  %s1 = inlined_call_operand.vmem [shape: f32[32,1], index: 1, kind: input, shape index: {}]
  %s2 = inlined_call_operand.vmem [shape: f32[32,1], index: 2, kind: input, shape index: {}]
  %s3 = inlined_call_operand.vmem [shape: bf16[32,128], index: 3, kind: output, shape index: {}]
  %s4 = sld [smem:[#allocation0]]
  $region22: #{generator_forward.6} parent=0
    _
  %s6 = ssub.s32 1, %s4
  %s7 = scalar_select 0, %s6, %s4
  // Predicated region
  $region2: #{generator_forward.6} parent=0 // pred_check
    _
  $region3: #{generator_forward.6} parent=0 // pred_check_branch
    %9 = sbr.rel (0) target = $region5
  $region4: #{generator_forward.6} parent=0 // pred_region
    _
  $region5: #{generator_forward.6} parent=0 // pred_fallthru
    _
  // Predicated region
  $region6: #{generator_forward.6} parent=0 // pred_check
    _
  $region7: #{generator_forward.6} parent=0 // pred_check_branch
    %11 = sbr.rel (0) target = $region9
  $region8: #{generator_forward.6} parent=0 // pred_region
    _
  $region9: #{generator_forward.6} parent=0 // pred_fallthru
    _
  // Predicated region
  $region10: #{generator_forward.6} parent=0 // pred_check
    _
  $region11: #{generator_forward.6} parent=0 // pred_check_branch
    %13 = sbr.rel (0) target = $region13
  $region12: #{generator_forward.6} parent=0 // pred_region
    _
  $region13: #{generator_forward.6} parent=0 // pred_fallthru
    _
  %v14 = vld [vmem:[%s0] sm:$0xf]
  %v15 = vld [vmem:[%s0 + $0x4] sm:$0xf]
  %v16 = vld [vmem:[%s0 + $0x8] sm:$0xf]
  %v17 = vld [vmem:[%s0 + $0xc] sm:$0xf]
  %v18 = vunpack.c.l.bf16 %v14
  %v19 = vunpack.c.l.bf16 %v15
  %v20 = vunpack.c.l.bf16 %v16
  %v21 = vunpack.c.l.bf16 %v17
  %v22 = vld [vmem:[%s1] sm:$0xff]
  %v23 = vld [vmem:[%s1 + $0x8] sm:$0xff]
  %v24 = vld [vmem:[%s1 + $0x10] sm:$0xff]
  %v25 = vld [vmem:[%s1 + $0x18] sm:$0xff]
  %27 = vset.pattern.permute.xlu0 0
  %28 = vperm.xlu0 %27, %v22
  %v29 = vpop.permute.xlu0 %28
  %32 = vset.pattern.permute.xlu0 0
  %33 = vperm.xlu0 %32, %v23
  %v34 = vpop.permute.xlu0 %33
  %37 = vset.pattern.permute.xlu0 0
  %38 = vperm.xlu0 %37, %v24
  %v39 = vpop.permute.xlu0 %38
  %42 = vset.pattern.permute.xlu0 0
  %43 = vperm.xlu0 %42, %v25
  %v44 = vpop.permute.xlu0 %43
  %v46 = vmul.f32 %v18, %v29
  %v47 = vmul.f32 %v19, %v34
  %v48 = vmul.f32 %v20, %v39
  %v49 = vmul.f32 %v21, %v44
  %v50 = vld [vmem:[%s2] sm:$0xff]
  %v51 = vld [vmem:[%s2 + $0x8] sm:$0xff]
  %v52 = vld [vmem:[%s2 + $0x10] sm:$0xff]
  %v53 = vld [vmem:[%s2 + $0x18] sm:$0xff]
  %55 = vset.pattern.permute.xlu0 0
  %56 = vperm.xlu0 %55, %v50
  %v57 = vpop.permute.xlu0 %56
  %60 = vset.pattern.permute.xlu0 0
  %61 = vperm.xlu0 %60, %v51
  %v62 = vpop.permute.xlu0 %61
  %65 = vset.pattern.permute.xlu0 0
  %66 = vperm.xlu0 %65, %v52
  %v67 = vpop.permute.xlu0 %66
  %70 = vset.pattern.permute.xlu0 0
  %71 = vperm.xlu0 %70, %v53
  %v72 = vpop.permute.xlu0 %71
  %v74 = vadd.f32 %v46, %v57
  %v75 = vadd.f32 %v47, %v62
  %v76 = vadd.f32 %v48, %v67
  %v77 = vadd.f32 %v49, %v72
  %v78 = vmax.f32 %v74, 0.0
  %v79 = vmax.f32 %v75, 0.0
  %v80 = vmax.f32 %v76, 0.0
  %v81 = vmax.f32 %v77, 0.0
  %v82 = vpack.c.bf16 %v79, %v78
  %v83 = vpack.c.bf16 %v81, %v80
  %v86 = vunpack.c.l.b16 %v82
  %v87 = vunpack.c.h.b16 %v82
  %v88 = vunpack.c.l.b16 %v83
  %v89 = vunpack.c.h.b16 %v83
  %v90 = vpack.c.b16 %v86, %v86
  %v91 = vpack.c.b16 %v87, %v87
  %v92 = vpack.c.b16 %v88, %v88
  %v93 = vpack.c.b16 %v89, %v89
  %98 = vst [vmem:[%s3] sm:$0xf] %v90
  %99 = vst [vmem:[%s3 + $0x4] sm:$0xf] %v91
  %100 = vst [vmem:[%s3 + $0x8] sm:$0xf] %v92
  %101 = vst [vmem:[%s3 + $0xc] sm:$0xf] %v93
  // Predicated region
  $region14: #{generator_forward.6} parent=0 // pred_check
    _
  $region15: #{generator_forward.6} parent=0 // pred_check_branch
    %103 = sbr.rel (0) target = $region17
  $region16: #{generator_forward.6} parent=0 // pred_region
    _
  $region17: #{generator_forward.6} parent=0 // pred_fallthru
    _
  // Predicated region
  $region18: #{generator_forward.6} parent=0 // pred_check
    _
  $region19: #{generator_forward.6} parent=0 // pred_check_branch
    %105 = sbr.rel (0) target = $region21
  $region20: #{generator_forward.6} parent=0 // pred_region
    _
  $region21: #{generator_forward.6} parent=0 // pred_fallthru
    _

// kernel: generator_forward.5
$region0: #{generator_forward.5}
  #allocation0 [shape = 'u32[]', space=smem, size = 0x4, offset = 0x4, fixed_abs, tag = 'smem constant byte address 0x4 - core index']
  #allocation1 [shape = 'u32[144,128]{1,0:T(1,128)}', space=vmem, size = 0x12000, scoped, tag = 'internal scratch']
  %s0 = inlined_call_operand.vmem [shape: bf16[4,64,128], index: 0, kind: input, shape index: {}]
  %s1 = inlined_call_operand.vmem [shape: bf16[4,8,64], index: 1, kind: input, shape index: {}]
  %s2 = inlined_call_operand.vmem [shape: bf16[4,8,128], index: 2, kind: output, shape index: {0}]
  %s3 = inlined_call_operand.vmem [shape: f32[1,8,1], index: 3, kind: output, shape index: {1}]
  %s4 = inlined_call_operand.vmem [shape: f32[1,8,1], index: 4, kind: output, shape index: {2}]
  %5 = xla_tuple %s2, %s3, %s4
  %s6 = sld [smem:[#allocation0]]
  $region34: #{generator_forward.5} parent=0
    _
  %s8 = ssub.s32 1, %s6
  %s9 = scalar_select 0, %s8, %s6
  // Predicated region
  $region2: #{generator_forward.5} parent=0 // pred_check
    _
  $region3: #{generator_forward.5} parent=0 // pred_check_branch
    %11 = sbr.rel (0) target = $region5
  $region4: #{generator_forward.5} parent=0 // pred_region
    _
  $region5: #{generator_forward.5} parent=0 // pred_fallthru
    _
  // Predicated region
  $region6: #{generator_forward.5} parent=0 // pred_check
    _
  $region7: #{generator_forward.5} parent=0 // pred_check_branch
    %13 = sbr.rel (0) target = $region9
  $region8: #{generator_forward.5} parent=0 // pred_region
    _
  $region9: #{generator_forward.5} parent=0 // pred_fallthru
    _
  %v15 = vld [vmem:[%s1] sm:$0xf]
  %v16 = vld [vmem:[%s0] sm:$0xf]
  %v17 = vld [vmem:[%s0 + $0x4] sm:$0xf]
  %v18 = vld [vmem:[%s0 + $0x8] sm:$0xf]
  %v19 = vld [vmem:[%s0 + $0xc] sm:$0xf]
  %v20 = vld [vmem:[%s0 + $0x10] sm:$0xf]
  %v21 = vld [vmem:[%s0 + $0x14] sm:$0xf]
  %v22 = vld [vmem:[%s0 + $0x18] sm:$0xf]
  %v23 = vld [vmem:[%s0 + $0x1c] sm:$0xf]
  %v32 = vunpack.c.l.b16 %v16
  %v33 = vunpack.c.l.b16 %v17
  %v34 = vunpack.c.l.b16 %v18
  %v35 = vunpack.c.l.b16 %v19
  %v36 = vunpack.c.l.b16 %v20
  %v37 = vunpack.c.l.b16 %v21
  %v38 = vunpack.c.l.b16 %v22
  %v39 = vunpack.c.l.b16 %v23
  %v40 = vpack.c.b16 %v33, %v32
  %v41 = vpack.c.b16 %v35, %v34
  %v42 = vpack.c.b16 %v37, %v36
  %v43 = vpack.c.b16 %v39, %v38
  %vm48 = vcmask 523264
  %v50 = vsel %vm48, %v15, 0
  %52 = vmatprep.subr.bf16.mxu0 0
  %53 = vmatpush1.bf16.msra.mxu0 %v40
  %54 = vmatprep.subr.bf16.mxu0 0
  %55 = vmatpush1.bf16.msra.mxu0 %v41
  %56 = vmatprep.subr.bf16.mxu0 0
  %57 = vmatpush1.bf16.msra.mxu0 %v42
  %58 = vmatprep.subr.bf16.mxu0 0
  %59 = vmatpush1.bf16.msra.mxu0 %v43
  %60 = vmatprep.subr.bf16.mxu0 0
  %61 = vmatpush1.bf16.msra.mxu0 0
  %62 = vmatprep.subr.bf16.mxu0 0
  %63 = vmatpush1.bf16.msra.mxu0 0
  %64 = vmatprep.subr.bf16.mxu0 0
  %65 = vmatpush1.bf16.msra.mxu0 0
  %66 = vmatprep.subr.bf16.mxu0 0
  %67 = vmatpush1.bf16.msra.mxu0 0
  %68 = vmatprep.subr.bf16.mxu0 0
  %69 = vmatpush1.bf16.msra.mxu0 0
  %70 = vmatprep.subr.bf16.mxu0 0
  %71 = vmatpush1.bf16.msra.mxu0 0
  %72 = vmatprep.subr.bf16.mxu0 0
  %73 = vmatpush1.bf16.msra.mxu0 0
  %74 = vmatprep.subr.bf16.mxu0 0
  %75 = vmatpush1.bf16.msra.mxu0 0
  %76 = vmatprep.subr.bf16.mxu0 0
  %77 = vmatpush1.bf16.msra.mxu0 0
  %78 = vmatprep.subr.bf16.mxu0 0
  %79 = vmatpush1.bf16.msra.mxu0 0
  %80 = vmatprep.subr.bf16.mxu0 0
  %81 = vmatpush1.bf16.msra.mxu0 0
  %82 = vmatprep.subr.bf16.mxu0 0
  %83 = vmatpush1.bf16.msra.mxu0 0
  %84 = vmatprep.mubr.bf16.mxu0 0
  %85 = vmatmul.mubr.bf16.gmra.mrb[0].mxu0 %v50
  %v86 = vpop.f32.mrb[0].mxu0
  %v87 = vadd.f32 0.0, %v86
  %v88 = vpop.f32.mrb[0].mxu0
  %v89 = vpop.f32.mrb[0].mxu0
  %v90 = vpop.f32.mrb[0].mxu0
  %91 = vdwg.mxu0
  %v92 = vpack.c.bf16 %v87, %v87
  %93 = vst [vmem:[%s2] sm:$0xf] %v92
  %94 = vadd.xlane.f32.xlu0 %v87
  %v95 = vpop.xlane.xlu0 %94
  %v96 = vadd.f32 %v95, 0.0
  %v97 = vmul.f32 %v87, %v87
  %98 = vadd.xlane.f32.xlu0 %v97
  %v99 = vpop.xlane.xlu0 %98
  %v100 = vadd.f32 %v99, 0.0
  %s101 = scalar_lea.vmem %s1, 4
  %v102 = vld [vmem:[%s101] sm:$0xf]
  %s103 = scalar_lea.vmem %s0, 32
  %v104 = vld [vmem:[%s103] sm:$0xf]
  %v105 = vld [vmem:[%s103 + $0x4] sm:$0xf]
  %v106 = vld [vmem:[%s103 + $0x8] sm:$0xf]
  %v107 = vld [vmem:[%s103 + $0xc] sm:$0xf]
  %v108 = vld [vmem:[%s103 + $0x10] sm:$0xf]
  %v109 = vld [vmem:[%s103 + $0x14] sm:$0xf]
  %v110 = vld [vmem:[%s103 + $0x18] sm:$0xf]
  %v111 = vld [vmem:[%s103 + $0x1c] sm:$0xf]
  %v120 = vunpack.c.l.b16 %v104
  %v121 = vunpack.c.l.b16 %v105
  %v122 = vunpack.c.l.b16 %v106
  %v123 = vunpack.c.l.b16 %v107
  %v124 = vunpack.c.l.b16 %v108
  %v125 = vunpack.c.l.b16 %v109
  %v126 = vunpack.c.l.b16 %v110
  %v127 = vunpack.c.l.b16 %v111
  %v128 = vpack.c.b16 %v121, %v120
  %v129 = vpack.c.b16 %v123, %v122
  %v130 = vpack.c.b16 %v125, %v124
  %v131 = vpack.c.b16 %v127, %v126
  %v137 = vsel %vm48, %v102, 0
  %139 = vmatprep.subr.bf16.mxu0 0
  %140 = vmatpush1.bf16.msra.mxu0 %v128
  %141 = vmatprep.subr.bf16.mxu0 0
  %142 = vmatpush1.bf16.msra.mxu0 %v129
  %143 = vmatprep.subr.bf16.mxu0 0
  %144 = vmatpush1.bf16.msra.mxu0 %v130
  %145 = vmatprep.subr.bf16.mxu0 0
  %146 = vmatpush1.bf16.msra.mxu0 %v131
  %147 = vmatprep.subr.bf16.mxu0 0
  %148 = vmatpush1.bf16.msra.mxu0 0
  %149 = vmatprep.subr.bf16.mxu0 0
  %150 = vmatpush1.bf16.msra.mxu0 0
  %151 = vmatprep.subr.bf16.mxu0 0
  %152 = vmatpush1.bf16.msra.mxu0 0
  %153 = vmatprep.subr.bf16.mxu0 0
  %154 = vmatpush1.bf16.msra.mxu0 0
  %155 = vmatprep.subr.bf16.mxu0 0
  %156 = vmatpush1.bf16.msra.mxu0 0
  %157 = vmatprep.subr.bf16.mxu0 0
  %158 = vmatpush1.bf16.msra.mxu0 0
  %159 = vmatprep.subr.bf16.mxu0 0
  %160 = vmatpush1.bf16.msra.mxu0 0
  %161 = vmatprep.subr.bf16.mxu0 0
  %162 = vmatpush1.bf16.msra.mxu0 0
  %163 = vmatprep.subr.bf16.mxu0 0
  %164 = vmatpush1.bf16.msra.mxu0 0
  %165 = vmatprep.subr.bf16.mxu0 0
  %166 = vmatpush1.bf16.msra.mxu0 0
  %167 = vmatprep.subr.bf16.mxu0 0
  %168 = vmatpush1.bf16.msra.mxu0 0
  %169 = vmatprep.subr.bf16.mxu0 0
  %170 = vmatpush1.bf16.msra.mxu0 0
  %171 = vmatprep.mubr.bf16.mxu0 0
  %172 = vmatmul.mubr.bf16.gmra.mrb[0].mxu0 %v137
  %v173 = vpop.f32.mrb[0].mxu0
  %v174 = vadd.f32 0.0, %v173
  %v175 = vpop.f32.mrb[0].mxu0
  %v176 = vpop.f32.mrb[0].mxu0
  %v177 = vpop.f32.mrb[0].mxu0
  %178 = vdwg.mxu0
  %v179 = vpack.c.bf16 %v174, %v174
  %s180 = scalar_lea.vmem %s2, 4
  %181 = vst [vmem:[%s180] sm:$0xf] %v179
  %182 = vadd.xlane.f32.xlu0 %v174
  %v183 = vpop.xlane.xlu0 %182
  %v184 = vadd.f32 %v96, %v183
  %v185 = vmul.f32 %v174, %v174
  %186 = vadd.xlane.f32.xlu0 %v185
  %v187 = vpop.xlane.xlu0 %186
  %v188 = vadd.f32 %v100, %v187
  %s189 = scalar_lea.vmem %s1, 8
  %v190 = vld [vmem:[%s189] sm:$0xf]
  %s191 = scalar_lea.vmem %s0, 64
  %v192 = vld [vmem:[%s191] sm:$0xf]
  %v193 = vld [vmem:[%s191 + $0x4] sm:$0xf]
  %v194 = vld [vmem:[%s191 + $0x8] sm:$0xf]
  %v195 = vld [vmem:[%s191 + $0xc] sm:$0xf]
  %v196 = vld [vmem:[%s191 + $0x10] sm:$0xf]
  %v197 = vld [vmem:[%s191 + $0x14] sm:$0xf]
  %v198 = vld [vmem:[%s191 + $0x18] sm:$0xf]
  %v199 = vld [vmem:[%s191 + $0x1c] sm:$0xf]
  %v208 = vunpack.c.l.b16 %v192
  %v209 = vunpack.c.l.b16 %v193
  %v210 = vunpack.c.l.b16 %v194
  %v211 = vunpack.c.l.b16 %v195
  %v212 = vunpack.c.l.b16 %v196
  %v213 = vunpack.c.l.b16 %v197
  %v214 = vunpack.c.l.b16 %v198
  %v215 = vunpack.c.l.b16 %v199
  %v216 = vpack.c.b16 %v209, %v208
  %v217 = vpack.c.b16 %v211, %v210
  %v218 = vpack.c.b16 %v213, %v212
  %v219 = vpack.c.b16 %v215, %v214
  %v225 = vsel %vm48, %v190, 0
  %227 = vmatprep.subr.bf16.mxu0 0
  %228 = vmatpush1.bf16.msra.mxu0 %v216
  %229 = vmatprep.subr.bf16.mxu0 0
  %230 = vmatpush1.bf16.msra.mxu0 %v217
  %231 = vmatprep.subr.bf16.mxu0 0
  %232 = vmatpush1.bf16.msra.mxu0 %v218
  %233 = vmatprep.subr.bf16.mxu0 0
  %234 = vmatpush1.bf16.msra.mxu0 %v219
  %235 = vmatprep.subr.bf16.mxu0 0
  %236 = vmatpush1.bf16.msra.mxu0 0
  %237 = vmatprep.subr.bf16.mxu0 0
  %238 = vmatpush1.bf16.msra.mxu0 0
  %239 = vmatprep.subr.bf16.mxu0 0
  %240 = vmatpush1.bf16.msra.mxu0 0
  %241 = vmatprep.subr.bf16.mxu0 0
  %242 = vmatpush1.bf16.msra.mxu0 0
  %243 = vmatprep.subr.bf16.mxu0 0
  %244 = vmatpush1.bf16.msra.mxu0 0
  %245 = vmatprep.subr.bf16.mxu0 0
  %246 = vmatpush1.bf16.msra.mxu0 0
  %247 = vmatprep.subr.bf16.mxu0 0
  %248 = vmatpush1.bf16.msra.mxu0 0
  %249 = vmatprep.subr.bf16.mxu0 0
  %250 = vmatpush1.bf16.msra.mxu0 0
  %251 = vmatprep.subr.bf16.mxu0 0
  %252 = vmatpush1.bf16.msra.mxu0 0
  %253 = vmatprep.subr.bf16.mxu0 0
  %254 = vmatpush1.bf16.msra.mxu0 0
  %255 = vmatprep.subr.bf16.mxu0 0
  %256 = vmatpush1.bf16.msra.mxu0 0
  %257 = vmatprep.subr.bf16.mxu0 0
  %258 = vmatpush1.bf16.msra.mxu0 0
  %259 = vmatprep.mubr.bf16.mxu0 0
  %260 = vmatmul.mubr.bf16.gmra.mrb[0].mxu0 %v225
  %v261 = vpop.f32.mrb[0].mxu0
  %v262 = vadd.f32 0.0, %v261
  %v263 = vpop.f32.mrb[0].mxu0
  %v264 = vpop.f32.mrb[0].mxu0
  %v265 = vpop.f32.mrb[0].mxu0
  %266 = vdwg.mxu0
  %v267 = vpack.c.bf16 %v262, %v262
  %s268 = scalar_lea.vmem %s2, 8
  %269 = vst [vmem:[%s268] sm:$0xf] %v267
  %270 = vadd.xlane.f32.xlu0 %v262
  %v271 = vpop.xlane.xlu0 %270
  %v272 = vadd.f32 %v184, %v271
  %v273 = vmul.f32 %v262, %v262
  %274 = vadd.xlane.f32.xlu0 %v273
  %v275 = vpop.xlane.xlu0 %274
  %v276 = vadd.f32 %v188, %v275
  %s277 = scalar_lea.vmem %s1, 12
  %v278 = vld [vmem:[%s277] sm:$0xf]
  %s279 = scalar_lea.vmem %s0, 96
  %v280 = vld [vmem:[%s279] sm:$0xf]
  %v281 = vld [vmem:[%s279 + $0x4] sm:$0xf]
  %v282 = vld [vmem:[%s279 + $0x8] sm:$0xf]
  %v283 = vld [vmem:[%s279 + $0xc] sm:$0xf]
  %v284 = vld [vmem:[%s279 + $0x10] sm:$0xf]
  %v285 = vld [vmem:[%s279 + $0x14] sm:$0xf]
  %v286 = vld [vmem:[%s279 + $0x18] sm:$0xf]
  %v287 = vld [vmem:[%s279 + $0x1c] sm:$0xf]
  %v296 = vunpack.c.l.b16 %v280
  %v297 = vunpack.c.l.b16 %v281
  %v298 = vunpack.c.l.b16 %v282
  %v299 = vunpack.c.l.b16 %v283
  %v300 = vunpack.c.l.b16 %v284
  %v301 = vunpack.c.l.b16 %v285
  %v302 = vunpack.c.l.b16 %v286
  %v303 = vunpack.c.l.b16 %v287
  %v304 = vpack.c.b16 %v297, %v296
  %v305 = vpack.c.b16 %v299, %v298
  %v306 = vpack.c.b16 %v301, %v300
  %v307 = vpack.c.b16 %v303, %v302
  %v313 = vsel %vm48, %v278, 0
  %315 = vmatprep.subr.bf16.mxu0 0
  %316 = vmatpush1.bf16.msra.mxu0 %v304
  %317 = vmatprep.subr.bf16.mxu0 0
  %318 = vmatpush1.bf16.msra.mxu0 %v305
  %319 = vmatprep.subr.bf16.mxu0 0
  %320 = vmatpush1.bf16.msra.mxu0 %v306
  %321 = vmatprep.subr.bf16.mxu0 0
  %322 = vmatpush1.bf16.msra.mxu0 %v307
  %323 = vmatprep.subr.bf16.mxu0 0
  %324 = vmatpush1.bf16.msra.mxu0 0
  %325 = vmatprep.subr.bf16.mxu0 0
  %326 = vmatpush1.bf16.msra.mxu0 0
  %327 = vmatprep.subr.bf16.mxu0 0
  %328 = vmatpush1.bf16.msra.mxu0 0
  %329 = vmatprep.subr.bf16.mxu0 0
  %330 = vmatpush1.bf16.msra.mxu0 0
  %331 = vmatprep.subr.bf16.mxu0 0
  %332 = vmatpush1.bf16.msra.mxu0 0
  %333 = vmatprep.subr.bf16.mxu0 0
  %334 = vmatpush1.bf16.msra.mxu0 0
  %335 = vmatprep.subr.bf16.mxu0 0
  %336 = vmatpush1.bf16.msra.mxu0 0
  %337 = vmatprep.subr.bf16.mxu0 0
  %338 = vmatpush1.bf16.msra.mxu0 0
  %339 = vmatprep.subr.bf16.mxu0 0
  %340 = vmatpush1.bf16.msra.mxu0 0
  %341 = vmatprep.subr.bf16.mxu0 0
  %342 = vmatpush1.bf16.msra.mxu0 0
  %343 = vmatprep.subr.bf16.mxu0 0
  %344 = vmatpush1.bf16.msra.mxu0 0
  %345 = vmatprep.subr.bf16.mxu0 0
  %346 = vmatpush1.bf16.msra.mxu0 0
  %347 = vmatprep.mubr.bf16.mxu0 0
  %348 = vmatmul.mubr.bf16.gmra.mrb[0].mxu0 %v313
  %v349 = vpop.f32.mrb[0].mxu0
  %v350 = vadd.f32 0.0, %v349
  %v351 = vpop.f32.mrb[0].mxu0
  %v352 = vpop.f32.mrb[0].mxu0
  %v353 = vpop.f32.mrb[0].mxu0
  %354 = vdwg.mxu0
  %v355 = vpack.c.bf16 %v350, %v350
  %s356 = scalar_lea.vmem %s2, 12
  %357 = vst [vmem:[%s356] sm:$0xf] %v355
  %358 = vadd.xlane.f32.xlu0 %v350
  %v359 = vpop.xlane.xlu0 %358
  %v360 = vadd.f32 %v272, %v359
  %v361 = vmul.f32 %v350, %v350
  %362 = vadd.xlane.f32.xlu0 %v361
  %v363 = vpop.xlane.xlu0 %362
  %v364 = vadd.f32 %v276, %v363
  %vm365 = vcmask 7168
  %366 = vst.msk [vmem:[%s3] sm:$0xff] %vm365, %v360
  %367 = vst.msk [vmem:[%s4] sm:$0xff] %vm365, %v364
  // Predicated region
  $region10: #{generator_forward.5} parent=0 // pred_check
    _
  $region11: #{generator_forward.5} parent=0 // pred_check_branch
    %369 = sbr.rel (0) target = $region13
  $region12: #{generator_forward.5} parent=0 // pred_region
    _
  $region13: #{generator_forward.5} parent=0 // pred_fallthru
    _
  // Predicated region
  $region14: #{generator_forward.5} parent=0 // pred_check
    _
  $region15: #{generator_forward.5} parent=0 // pred_check_branch
    %371 = sbr.rel (0) target = $region17
  $region16: #{generator_forward.5} parent=0 // pred_region
    _
  $region17: #{generator_forward.5} parent=0 // pred_fallthru
    _
  // Predicated region
  $region18: #{generator_forward.5} parent=0 // pred_check
    _
  $region19: #{generator_forward.5} parent=0 // pred_check_branch
    %373 = sbr.rel (0) target = $region21
  $region20: #{generator_forward.5} parent=0 // pred_region
    _
  $region21: #{generator_forward.5} parent=0 // pred_fallthru
    _
  // Predicated region
  $region22: #{generator_forward.5} parent=0 // pred_check
    _
  $region23: #{generator_forward.5} parent=0 // pred_check_branch
    %375 = sbr.rel (0) target = $region25
  $region24: #{generator_forward.5} parent=0 // pred_region
    _
  $region25: #{generator_forward.5} parent=0 // pred_fallthru
    _
  // Predicated region
  $region26: #{generator_forward.5} parent=0 // pred_check
    _
  $region27: #{generator_forward.5} parent=0 // pred_check_branch
    %377 = sbr.rel (0) target = $region29
  $region28: #{generator_forward.5} parent=0 // pred_region
    _
  $region29: #{generator_forward.5} parent=0 // pred_fallthru
    _
  // Predicated region
  $region30: #{generator_forward.5} parent=0 // pred_check
    _
  $region31: #{generator_forward.5} parent=0 // pred_check_branch
    %379 = sbr.rel (0) target = $region33
  $region32: #{generator_forward.5} parent=0 // pred_region
    _
  $region33: #{generator_forward.5} parent=0 // pred_fallthru
    _

// kernel: generator_forward.7
$region0: #{generator_forward.7}
  #allocation0 [shape = 'u32[]', space=smem, size = 0x4, offset = 0x4, fixed_abs, tag = 'smem constant byte address 0x4 - core index']
  #allocation1 [shape = 'u32[144,128]{1,0:T(1,128)}', space=vmem, size = 0x12000, scoped, tag = 'internal scratch']
  %s0 = inlined_call_operand.vmem [shape: bf16[4,3,32], index: 0, kind: input, shape index: {}]
  %s1 = inlined_call_operand.vmem [shape: bf16[4,32,128], index: 1, kind: input, shape index: {}]
  %s2 = inlined_call_operand.vmem [shape: f32[3,1], index: 2, kind: input, shape index: {}]
  %s3 = inlined_call_operand.vmem [shape: f32[4,3,128], index: 3, kind: output, shape index: {}]
  %s4 = sld [smem:[#allocation0]]
  $region22: #{generator_forward.7} parent=0
    _
  %s6 = ssub.s32 1, %s4
  %s7 = scalar_select 0, %s6, %s4
  // Predicated region
  $region2: #{generator_forward.7} parent=0 // pred_check
    _
  $region3: #{generator_forward.7} parent=0 // pred_check_branch
    %9 = sbr.rel (0) target = $region5
  $region4: #{generator_forward.7} parent=0 // pred_region
    _
  $region5: #{generator_forward.7} parent=0 // pred_fallthru
    _
  // Predicated region
  $region6: #{generator_forward.7} parent=0 // pred_check
    _
  $region7: #{generator_forward.7} parent=0 // pred_check_branch
    %11 = sbr.rel (0) target = $region9
  $region8: #{generator_forward.7} parent=0 // pred_region
    _
  $region9: #{generator_forward.7} parent=0 // pred_fallthru
    _
  // Predicated region
  $region10: #{generator_forward.7} parent=0 // pred_check
    _
  $region11: #{generator_forward.7} parent=0 // pred_check_branch
    %13 = sbr.rel (0) target = $region13
  $region12: #{generator_forward.7} parent=0 // pred_region
    _
  $region13: #{generator_forward.7} parent=0 // pred_fallthru
    _
  %v15 = vld [vmem:[%s0] sm:$0x3]
  %v16 = vld [vmem:[%s1] sm:$0xf]
  %v17 = vld [vmem:[%s1 + $0x4] sm:$0xf]
  %v18 = vld [vmem:[%s1 + $0x8] sm:$0xf]
  %v19 = vld [vmem:[%s1 + $0xc] sm:$0xf]
  %v20 = vld [vmem:[%s2] sm:$0x7]
  %22 = vset.pattern.permute.xlu0 0
  %23 = vperm.xlu0 %22, %v20
  %v24 = vpop.permute.xlu0 %23
  %v30 = vunpack.c.l.b16 %v16
  %v31 = vunpack.c.l.b16 %v17
  %v32 = vunpack.c.l.b16 %v18
  %v33 = vunpack.c.l.b16 %v19
  %v34 = vpack.c.b16 %v31, %v30
  %v35 = vpack.c.b16 %v33, %v32
  %vm38 = vcmask 261120
  %v40 = vsel %vm38, %v15, 0
  %42 = vmatprep.subr.bf16.mxu0 0
  %43 = vmatpush1.bf16.msra.mxu0 %v34
  %44 = vmatprep.subr.bf16.mxu0 0
  %45 = vmatpush1.bf16.msra.mxu0 %v35
  %46 = vmatprep.subr.bf16.mxu0 0
  %47 = vmatpush1.bf16.msra.mxu0 0
  %48 = vmatprep.subr.bf16.mxu0 0
  %49 = vmatpush1.bf16.msra.mxu0 0
  %50 = vmatprep.subr.bf16.mxu0 0
  %51 = vmatpush1.bf16.msra.mxu0 0
  %52 = vmatprep.subr.bf16.mxu0 0
  %53 = vmatpush1.bf16.msra.mxu0 0
  %54 = vmatprep.subr.bf16.mxu0 0
  %55 = vmatpush1.bf16.msra.mxu0 0
  %56 = vmatprep.subr.bf16.mxu0 0
  %57 = vmatpush1.bf16.msra.mxu0 0
  %58 = vmatprep.subr.bf16.mxu0 0
  %59 = vmatpush1.bf16.msra.mxu0 0
  %60 = vmatprep.subr.bf16.mxu0 0
  %61 = vmatpush1.bf16.msra.mxu0 0
  %62 = vmatprep.subr.bf16.mxu0 0
  %63 = vmatpush1.bf16.msra.mxu0 0
  %64 = vmatprep.subr.bf16.mxu0 0
  %65 = vmatpush1.bf16.msra.mxu0 0
  %66 = vmatprep.subr.bf16.mxu0 0
  %67 = vmatpush1.bf16.msra.mxu0 0
  %68 = vmatprep.subr.bf16.mxu0 0
  %69 = vmatpush1.bf16.msra.mxu0 0
  %70 = vmatprep.subr.bf16.mxu0 0
  %71 = vmatpush1.bf16.msra.mxu0 0
  %72 = vmatprep.subr.bf16.mxu0 0
  %73 = vmatpush1.bf16.msra.mxu0 0
  %74 = vmatprep.mubr.bf16.mxu0 0
  %75 = vmatmul.mubr.bf16.gmra.mrb[0].mxu0 %v40
  %v76 = vpop.f32.mrb[0].mxu0
  %v77 = vadd.f32 %v24, %v76
  %v78 = vpop.f32.mrb[0].mxu0
  %v79 = vpop.f32.mrb[0].mxu0
  %v80 = vpop.f32.mrb[0].mxu0
  %81 = vdwg.mxu0
  %v82 = vtanh.pop %v77
  %83 = vst [vmem:[%s3] sm:$0x7] %v82
  %s84 = scalar_lea.vmem %s0, 2
  %v85 = vld [vmem:[%s84] sm:$0x3]
  %s86 = scalar_lea.vmem %s1, 16
  %v87 = vld [vmem:[%s86] sm:$0xf]
  %v88 = vld [vmem:[%s86 + $0x4] sm:$0xf]
  %v89 = vld [vmem:[%s86 + $0x8] sm:$0xf]
  %v90 = vld [vmem:[%s86 + $0xc] sm:$0xf]
  %v91 = vld [vmem:[%s2] sm:$0x7]
  %93 = vset.pattern.permute.xlu0 0
  %94 = vperm.xlu0 %93, %v91
  %v95 = vpop.permute.xlu0 %94
  %v101 = vunpack.c.l.b16 %v87
  %v102 = vunpack.c.l.b16 %v88
  %v103 = vunpack.c.l.b16 %v89
  %v104 = vunpack.c.l.b16 %v90
  %v105 = vpack.c.b16 %v102, %v101
  %v106 = vpack.c.b16 %v104, %v103
  %v110 = vsel %vm38, %v85, 0
  %112 = vmatprep.subr.bf16.mxu0 0
  %113 = vmatpush1.bf16.msra.mxu0 %v105
  %114 = vmatprep.subr.bf16.mxu0 0
  %115 = vmatpush1.bf16.msra.mxu0 %v106
  %116 = vmatprep.subr.bf16.mxu0 0
  %117 = vmatpush1.bf16.msra.mxu0 0
  %118 = vmatprep.subr.bf16.mxu0 0
  %119 = vmatpush1.bf16.msra.mxu0 0
  %120 = vmatprep.subr.bf16.mxu0 0
  %121 = vmatpush1.bf16.msra.mxu0 0
  %122 = vmatprep.subr.bf16.mxu0 0
  %123 = vmatpush1.bf16.msra.mxu0 0
  %124 = vmatprep.subr.bf16.mxu0 0
  %125 = vmatpush1.bf16.msra.mxu0 0
  %126 = vmatprep.subr.bf16.mxu0 0
  %127 = vmatpush1.bf16.msra.mxu0 0
  %128 = vmatprep.subr.bf16.mxu0 0
  %129 = vmatpush1.bf16.msra.mxu0 0
  %130 = vmatprep.subr.bf16.mxu0 0
  %131 = vmatpush1.bf16.msra.mxu0 0
  %132 = vmatprep.subr.bf16.mxu0 0
  %133 = vmatpush1.bf16.msra.mxu0 0
  %134 = vmatprep.subr.bf16.mxu0 0
  %135 = vmatpush1.bf16.msra.mxu0 0
  %136 = vmatprep.subr.bf16.mxu0 0
  %137 = vmatpush1.bf16.msra.mxu0 0
  %138 = vmatprep.subr.bf16.mxu0 0
  %139 = vmatpush1.bf16.msra.mxu0 0
  %140 = vmatprep.subr.bf16.mxu0 0
  %141 = vmatpush1.bf16.msra.mxu0 0
  %142 = vmatprep.subr.bf16.mxu0 0
  %143 = vmatpush1.bf16.msra.mxu0 0
  %144 = vmatprep.mubr.bf16.mxu0 0
  %145 = vmatmul.mubr.bf16.gmra.mrb[0].mxu0 %v110
  %v146 = vpop.f32.mrb[0].mxu0
  %v147 = vadd.f32 %v95, %v146
  %v148 = vpop.f32.mrb[0].mxu0
  %v149 = vpop.f32.mrb[0].mxu0
  %v150 = vpop.f32.mrb[0].mxu0
  %151 = vdwg.mxu0
  %v152 = vtanh.pop %v147
  %s153 = scalar_lea.vmem %s3, 4
  %154 = vst [vmem:[%s153] sm:$0x7] %v152
  %s155 = scalar_lea.vmem %s0, 4
  %v156 = vld [vmem:[%s155] sm:$0x3]
  %s157 = scalar_lea.vmem %s1, 32
  %v158 = vld [vmem:[%s157] sm:$0xf]
  %v159 = vld [vmem:[%s157 + $0x4] sm:$0xf]
  %v160 = vld [vmem:[%s157 + $0x8] sm:$0xf]
  %v161 = vld [vmem:[%s157 + $0xc] sm:$0xf]
  %v162 = vld [vmem:[%s2] sm:$0x7]
  %164 = vset.pattern.permute.xlu0 0
  %165 = vperm.xlu0 %164, %v162
  %v166 = vpop.permute.xlu0 %165
  %v172 = vunpack.c.l.b16 %v158
  %v173 = vunpack.c.l.b16 %v159
  %v174 = vunpack.c.l.b16 %v160
  %v175 = vunpack.c.l.b16 %v161
  %v176 = vpack.c.b16 %v173, %v172
  %v177 = vpack.c.b16 %v175, %v174
  %v181 = vsel %vm38, %v156, 0
  %183 = vmatprep.subr.bf16.mxu0 0
  %184 = vmatpush1.bf16.msra.mxu0 %v176
  %185 = vmatprep.subr.bf16.mxu0 0
  %186 = vmatpush1.bf16.msra.mxu0 %v177
  %187 = vmatprep.subr.bf16.mxu0 0
  %188 = vmatpush1.bf16.msra.mxu0 0
  %189 = vmatprep.subr.bf16.mxu0 0
  %190 = vmatpush1.bf16.msra.mxu0 0
  %191 = vmatprep.subr.bf16.mxu0 0
  %192 = vmatpush1.bf16.msra.mxu0 0
  %193 = vmatprep.subr.bf16.mxu0 0
  %194 = vmatpush1.bf16.msra.mxu0 0
  %195 = vmatprep.subr.bf16.mxu0 0
  %196 = vmatpush1.bf16.msra.mxu0 0
  %197 = vmatprep.subr.bf16.mxu0 0
  %198 = vmatpush1.bf16.msra.mxu0 0
  %199 = vmatprep.subr.bf16.mxu0 0
  %200 = vmatpush1.bf16.msra.mxu0 0
  %201 = vmatprep.subr.bf16.mxu0 0
  %202 = vmatpush1.bf16.msra.mxu0 0
  %203 = vmatprep.subr.bf16.mxu0 0
  %204 = vmatpush1.bf16.msra.mxu0 0
  %205 = vmatprep.subr.bf16.mxu0 0
  %206 = vmatpush1.bf16.msra.mxu0 0
  %207 = vmatprep.subr.bf16.mxu0 0
  %208 = vmatpush1.bf16.msra.mxu0 0
  %209 = vmatprep.subr.bf16.mxu0 0
  %210 = vmatpush1.bf16.msra.mxu0 0
  %211 = vmatprep.subr.bf16.mxu0 0
  %212 = vmatpush1.bf16.msra.mxu0 0
  %213 = vmatprep.subr.bf16.mxu0 0
  %214 = vmatpush1.bf16.msra.mxu0 0
  %215 = vmatprep.mubr.bf16.mxu0 0
  %216 = vmatmul.mubr.bf16.gmra.mrb[0].mxu0 %v181
  %v217 = vpop.f32.mrb[0].mxu0
  %v218 = vadd.f32 %v166, %v217
  %v219 = vpop.f32.mrb[0].mxu0
  %v220 = vpop.f32.mrb[0].mxu0
  %v221 = vpop.f32.mrb[0].mxu0
  %222 = vdwg.mxu0
  %v223 = vtanh.pop %v218
  %s224 = scalar_lea.vmem %s3, 8
  %225 = vst [vmem:[%s224] sm:$0x7] %v223
  %s226 = scalar_lea.vmem %s0, 6
  %v227 = vld [vmem:[%s226] sm:$0x3]
  %s228 = scalar_lea.vmem %s1, 48
  %v229 = vld [vmem:[%s228] sm:$0xf]
  %v230 = vld [vmem:[%s228 + $0x4] sm:$0xf]
  %v231 = vld [vmem:[%s228 + $0x8] sm:$0xf]
  %v232 = vld [vmem:[%s228 + $0xc] sm:$0xf]
  %v233 = vld [vmem:[%s2] sm:$0x7]
  %235 = vset.pattern.permute.xlu0 0
  %236 = vperm.xlu0 %235, %v233
  %v237 = vpop.permute.xlu0 %236
  %v243 = vunpack.c.l.b16 %v229
  %v244 = vunpack.c.l.b16 %v230
  %v245 = vunpack.c.l.b16 %v231
  %v246 = vunpack.c.l.b16 %v232
  %v247 = vpack.c.b16 %v244, %v243
  %v248 = vpack.c.b16 %v246, %v245
  %v252 = vsel %vm38, %v227, 0
  %254 = vmatprep.subr.bf16.mxu0 0
  %255 = vmatpush1.bf16.msra.mxu0 %v247
  %256 = vmatprep.subr.bf16.mxu0 0
  %257 = vmatpush1.bf16.msra.mxu0 %v248
  %258 = vmatprep.subr.bf16.mxu0 0
  %259 = vmatpush1.bf16.msra.mxu0 0
  %260 = vmatprep.subr.bf16.mxu0 0
  %261 = vmatpush1.bf16.msra.mxu0 0
  %262 = vmatprep.subr.bf16.mxu0 0
  %263 = vmatpush1.bf16.msra.mxu0 0
  %264 = vmatprep.subr.bf16.mxu0 0
  %265 = vmatpush1.bf16.msra.mxu0 0
  %266 = vmatprep.subr.bf16.mxu0 0
  %267 = vmatpush1.bf16.msra.mxu0 0
  %268 = vmatprep.subr.bf16.mxu0 0
  %269 = vmatpush1.bf16.msra.mxu0 0
  %270 = vmatprep.subr.bf16.mxu0 0
  %271 = vmatpush1.bf16.msra.mxu0 0
  %272 = vmatprep.subr.bf16.mxu0 0
  %273 = vmatpush1.bf16.msra.mxu0 0
  %274 = vmatprep.subr.bf16.mxu0 0
  %275 = vmatpush1.bf16.msra.mxu0 0
  %276 = vmatprep.subr.bf16.mxu0 0
  %277 = vmatpush1.bf16.msra.mxu0 0
  %278 = vmatprep.subr.bf16.mxu0 0
  %279 = vmatpush1.bf16.msra.mxu0 0
  %280 = vmatprep.subr.bf16.mxu0 0
  %281 = vmatpush1.bf16.msra.mxu0 0
  %282 = vmatprep.subr.bf16.mxu0 0
  %283 = vmatpush1.bf16.msra.mxu0 0
  %284 = vmatprep.subr.bf16.mxu0 0
  %285 = vmatpush1.bf16.msra.mxu0 0
  %286 = vmatprep.mubr.bf16.mxu0 0
  %287 = vmatmul.mubr.bf16.gmra.mrb[0].mxu0 %v252
  %v288 = vpop.f32.mrb[0].mxu0
  %v289 = vadd.f32 %v237, %v288
  %v290 = vpop.f32.mrb[0].mxu0
  %v291 = vpop.f32.mrb[0].mxu0
  %v292 = vpop.f32.mrb[0].mxu0
  %293 = vdwg.mxu0
  %v294 = vtanh.pop %v289
  %s295 = scalar_lea.vmem %s3, 12
  %296 = vst [vmem:[%s295] sm:$0x7] %v294
  // Predicated region
  $region14: #{generator_forward.7} parent=0 // pred_check
    _
  $region15: #{generator_forward.7} parent=0 // pred_check_branch
    %298 = sbr.rel (0) target = $region17
  $region16: #{generator_forward.7} parent=0 // pred_region
    _
  $region17: #{generator_forward.7} parent=0 // pred_fallthru
    _
  // Predicated region
  $region18: #{generator_forward.7} parent=0 // pred_check
    _
  $region19: #{generator_forward.7} parent=0 // pred_check_branch
    %300 = sbr.rel (0) target = $region21
  $region20: #{generator_forward.7} parent=0 // pred_region
    _
  $region21: #{generator_forward.7} parent=0 // pred_fallthru
    _

</llo_original>
